<compile_context>
chip_gen: v6e
topology: v6e:2x2x1
jax: 0.10.0
libtpu: 0.0.40
codegen_flags: <defaults>
</compile_context>

<pallas_src>
import functools

import jax
import jax.numpy as jnp
import numpy as np
from jax import lax
from jax.experimental import pallas as pl
from jax.experimental.pallas import tpu as pltpu


def _round_up(x, m):
    return ((x + m - 1) // m) * m


def _char_rnn_kernel(ids_ref, wih_ref, whh_ref, b_ref, who_ref, bo_ref,
                     out_ref, *, seq_len, batch_tile, n_out_valid):
    """Id gather -> RNN recurrence -> Linear -> masked LogSoftmax (one tile)."""
    T = seq_len
    Bt = batch_tile
    b_off = pl.program_id(0) * Bt

    # Hoist weight/bias loads out of the recurrence (no per-step reloads).
    whh = whh_ref[...]                      # (H, H)
    bias = b_ref[...]                       # (1, H) == b_ih + b_hh

    def proj(t):
        # Row gather of w_ih^T by letter id.  ids live in SMEM (scalar
        # prefetch); each row is a (1, H) dynamic-sublane load from the
        # VMEM-resident weight.  Replaces the one-hot matmul + its HBM stream.
        rows = [wih_ref[pl.ds(ids_ref[t, b_off + b], 1), :] for b in range(Bt)]
        return jnp.concatenate(rows, axis=0) + bias           # (Bt, H)

    # t = 0 peeled: h0 == 0, so the 0 @ w_hh matmul is skipped entirely.
    h = jnp.tanh(proj(0))
    # T is small & static: unroll in Python.  proj(t) does not depend on h, so
    # the scheduler overlaps each gather with the previous step's MXU/EUP work;
    # proj never round-trips through a VMEM scratch.
    for t in range(1, T):
        h = jnp.tanh(proj(t) +
                     jnp.dot(h, whh, preferred_element_type=jnp.float32))

    # ---- h2o: (Bt, H) @ (H, O_pad) + b ----
    logits = (jnp.dot(h, who_ref[...], preferred_element_type=jnp.float32)
              + bo_ref[...])

    # ---- Masked LogSoftmax over the class dim (first n_out_valid cols real) --
    col = lax.broadcasted_iota(jnp.int32, logits.shape, 1)
    valid = col < n_out_valid
    masked = jnp.where(valid, logits, jnp.full_like(logits, -1e30))
    m = jnp.max(masked, axis=-1, keepdims=True)
    e = jnp.exp(masked - m)                 # padded lanes -> exp(-huge) == 0
    lse = m + jnp.log(jnp.sum(e, axis=-1, keepdims=True))
    out_ref[...] = jnp.where(valid, logits - lse, jnp.zeros_like(logits))


def char_rnn_forward_from_ids(letter_ids, w_ih, w_hh, b_ih, b_hh, w_ho, b_ho,
                              *, max_batch_tile=128):
    """letter_ids: (T, B) int32 letter indices.  Returns (B, O) log-probs."""
    T, B = letter_ids.shape
    I = w_ih.shape[1]
    H = w_hh.shape[0]
    O = w_ho.shape[0]

    LANE, SUB = 128, 8
    I_pad = _round_up(I, SUB)       # gather only ever reads rows < I
    O_pad = _round_up(O, LANE)      # lane-dense output block

    # Batch tile: multiple of 8 sublanes (full, unmasked stores).  When the
    # batch allows, use >= 2 tiles so ("parallel",) can use both v7x TCs.
    B_sub = _round_up(B, SUB)
    if B_sub >= 2 * SUB:
        B_tile = min(max_batch_tile, _round_up((B_sub + 1) // 2, SUB))
    else:
        B_tile = B_sub
    B_pad = _round_up(B_sub, B_tile)

    # Padded batch columns get id 0 (a valid row); their outputs are sliced off.
    ids_p = jnp.zeros((T, B_pad), jnp.int32).at[:, :B].set(
        letter_ids.astype(jnp.int32))
    wih_t = jnp.zeros((I_pad, H), jnp.float32).at[:I, :].set(
        jnp.asarray(w_ih, jnp.float32).T)                            # (I_pad, H)
    whh_t = jnp.asarray(w_hh, jnp.float32).T                         # (H, H)
    b_sum = (b_ih + b_hh).reshape(1, H).astype(jnp.float32)          # (1, H)
    who_t = jnp.zeros((H, O_pad), jnp.float32).at[:, :O].set(
        jnp.asarray(w_ho, jnp.float32).T)                            # (H, O_pad)
    bo_p = jnp.zeros((1, O_pad), jnp.float32).at[:, :O].set(
        jnp.asarray(b_ho, jnp.float32).reshape(1, O))

    kernel = functools.partial(_char_rnn_kernel, seq_len=T, batch_tile=B_tile,
                               n_out_valid=O)

    out_p = pl.pallas_call(
        kernel,
        out_shape=jax.ShapeDtypeStruct((B_pad, O_pad), jnp.float32),
        grid_spec=pltpu.PrefetchScalarGridSpec(
            num_scalar_prefetch=1,                  # letter ids -> SMEM
            grid=(B_pad // B_tile,),
            in_specs=[
                pl.BlockSpec((I_pad, H), lambda b, ids: (0, 0)),     # w_ih^T
                pl.BlockSpec((H, H), lambda b, ids: (0, 0)),         # w_hh^T
                pl.BlockSpec((1, H), lambda b, ids: (0, 0)),         # b_ih+b_hh
                pl.BlockSpec((H, O_pad), lambda b, ids: (0, 0)),     # w_ho^T
                pl.BlockSpec((1, O_pad), lambda b, ids: (0, 0)),     # b_ho
            ],
            out_specs=pl.BlockSpec((B_tile, O_pad), lambda b, ids: (b, 0)),
        ),
        compiler_params=pltpu.CompilerParams(
            dimension_semantics=("parallel",)),   # split batch tiles across TCs
    )(ids_p, wih_t, whh_t, b_sum, who_t, bo_p)

    return out_p[:B, :O]


def char_rnn_forward(x, w_ih, w_hh, b_ih, b_hh, w_ho, b_ho, **kw):
    """x: (T, B, I) one-hot line tensor (lineToTensor layout, batched).

    The one-hot is collapsed to letter ids in the wrapper so the kernel never
    streams the 128x-padded one-hot through HBM.
    """
    ids = jnp.argmax(x, axis=-1).astype(jnp.int32)   # exact for one-hot rows
    return char_rnn_forward_from_ids(ids, w_ih, w_hh, b_ih, b_hh, w_ho, b_ho,
                                     **kw)


def char_rnn_reference(x, w_ih, w_hh, b_ih, b_hh, w_ho, b_ho):
    """Pure-JAX reference matching torch.nn.RNN + Linear + LogSoftmax(dim=1)."""
    T, B, _ = x.shape
    H = w_hh.shape[0]
    h = jnp.zeros((B, H), jnp.float32)
    for t in range(T):
        h = jnp.tanh(x[t] @ w_ih.T + b_ih + h @ w_hh.T + b_hh)
    logits = h @ w_ho.T + b_ho
    return jax.nn.log_softmax(logits, axis=1)


if __name__ == "__main__":
    # Module-implied sizes (kept small, as in the script):
    n_letters = 58          # len(string.ascii_letters + " .,;'" + "_")
    n_hidden = 128
    n_classes = 18          # number of language labels in data/names
    seq_len = 8

    key = jax.random.PRNGKey(0)
    k_idx, k1, k2, k3, k4, k5, k6, k_idx2 = jax.random.split(key, 8)

    # Deterministic parameter init (PyTorch-style uniform(-1/sqrt(H), 1/sqrt(H))).
    bound = 1.0 / np.sqrt(n_hidden)
    w_ih = jax.random.uniform(k1, (n_hidden, n_letters), jnp.float32, -bound, bound)
    w_hh = jax.random.uniform(k2, (n_hidden, n_hidden), jnp.float32, -bound, bound)
    b_ih = jax.random.uniform(k3, (n_hidden,), jnp.float32, -bound, bound)
    b_hh = jax.random.uniform(k4, (n_hidden,), jnp.float32, -bound, bound)
    w_ho = jax.random.uniform(k5, (n_classes, n_hidden), jnp.float32, -bound, bound)
    b_ho = jax.random.uniform(k6, (n_classes,), jnp.float32, -bound, bound)

    # --- Test 1: single batch tile (grid = 1), like classifying 8 names. ---
    batch = 8
    letter_ids = jax.random.randint(k_idx, (seq_len, batch), 0, n_letters)
    x = jax.nn.one_hot(letter_ids, n_letters, dtype=jnp.float32)  # (T, B, I)

    out = char_rnn_forward(x, w_ih, w_hh, b_ih, b_hh, w_ho, b_ho)
    out = jax.block_until_ready(out)
    ref = char_rnn_reference(x, w_ih, w_hh, b_ih, b_hh, w_ho, b_ho)
    assert out.shape == (batch, n_classes), out.shape
    np.testing.assert_allclose(np.asarray(out), np.asarray(ref),
                               atol=1e-5, rtol=1e-5)

    # --- Test 2: batch split into 2 tiles (grid = 2; both v7x TCs busy). ---
    batch2 = 16
    letter_ids2 = jax.random.randint(k_idx2, (seq_len, batch2), 0, n_letters)
    x2 = jax.nn.one_hot(letter_ids2, n_letters, dtype=jnp.float32)

    out2 = char_rnn_forward(x2, w_ih, w_hh, b_ih, b_hh, w_ho, b_ho)
    out2 = jax.block_until_ready(out2)
    ref2 = char_rnn_reference(x2, w_ih, w_hh, b_ih, b_hh, w_ho, b_ho)
    assert out2.shape == (batch2, n_classes), out2.shape
    np.testing.assert_allclose(np.asarray(out2), np.asarray(ref2),
                               atol=1e-5, rtol=1e-5)

    print("KERNEL_OK")
</pallas_src>

<mosaic_0001>
module attributes {stable_mosaic.version = 11 : i64} {
  func.func @_char_rnn_kernel(%arg0: i32, %arg1: memref<8x8xi32, #tpu.memory_space<smem>>, %arg2: memref<64x128xf32, #tpu.memory_space<vmem>>, %arg3: memref<128x128xf32, #tpu.memory_space<vmem>>, %arg4: memref<1x128xf32, #tpu.memory_space<vmem>>, %arg5: memref<128x128xf32, #tpu.memory_space<vmem>>, %arg6: memref<1x128xf32, #tpu.memory_space<vmem>>, %arg7: memref<8x128xf32, #tpu.memory_space<vmem>>) attributes {dimension_semantics = [#tpu.dimension_semantics<parallel>], iteration_bounds = array<i64: 1>, scalar_prefetch = 1 : i64, scratch_operands = 0 : i64, tpu.core_type = #tpu.core_type<tc>, window_params = [{pipeline_mode = #tpu.pipeline_mode<synchronous>, transform_indices = @transform_0, window_bounds = array<i64: 64, 128>}, {pipeline_mode = #tpu.pipeline_mode<synchronous>, transform_indices = @transform_1, window_bounds = array<i64: 128, 128>}, {pipeline_mode = #tpu.pipeline_mode<synchronous>, transform_indices = @transform_2, window_bounds = array<i64: 1, 128>}, {pipeline_mode = #tpu.pipeline_mode<synchronous>, transform_indices = @transform_3, window_bounds = array<i64: 128, 128>}, {pipeline_mode = #tpu.pipeline_mode<synchronous>, transform_indices = @transform_4, window_bounds = array<i64: 1, 128>}, {transform_indices = @transform_5, window_bounds = array<i64: 8, 128>}]} {
    %c8_i32 = arith.constant 8 : i32
    %0 = arith.muli %arg0, %c8_i32 : i32
    %c0 = arith.constant 0 : index
    %c0_0 = arith.constant 0 : index
    %1 = vector.load %arg3[%c0, %c0_0] : memref<128x128xf32, #tpu.memory_space<vmem>>, vector<128x128xf32>
    %c0_1 = arith.constant 0 : index
    %c0_2 = arith.constant 0 : index
    %2 = vector.load %arg4[%c0_1, %c0_2] : memref<1x128xf32, #tpu.memory_space<vmem>>, vector<1x128xf32>
    %c0_i32 = arith.constant 0 : i32
    %3 = arith.addi %0, %c0_i32 : i32
    %c0_3 = arith.constant 0 : index
    %4 = arith.index_cast %3 : i32 to index
    %5 = memref.load %arg1[%c0_3, %4] : memref<8x8xi32, #tpu.memory_space<smem>>
    %6 = arith.index_cast %5 : i32 to index
    %c0_4 = arith.constant 0 : index
    %7 = vector.load %arg2[%6, %c0_4] : memref<64x128xf32, #tpu.memory_space<vmem>>, vector<1x128xf32>
    %c1_i32 = arith.constant 1 : i32
    %8 = arith.addi %0, %c1_i32 : i32
    %c0_5 = arith.constant 0 : index
    %9 = arith.index_cast %8 : i32 to index
    %10 = memref.load %arg1[%c0_5, %9] : memref<8x8xi32, #tpu.memory_space<smem>>
    %11 = arith.index_cast %10 : i32 to index
    %c0_6 = arith.constant 0 : index
    %12 = vector.load %arg2[%11, %c0_6] : memref<64x128xf32, #tpu.memory_space<vmem>>, vector<1x128xf32>
    %c2_i32 = arith.constant 2 : i32
    %13 = arith.addi %0, %c2_i32 : i32
    %c0_7 = arith.constant 0 : index
    %14 = arith.index_cast %13 : i32 to index
    %15 = memref.load %arg1[%c0_7, %14] : memref<8x8xi32, #tpu.memory_space<smem>>
    %16 = arith.index_cast %15 : i32 to index
    %c0_8 = arith.constant 0 : index
    %17 = vector.load %arg2[%16, %c0_8] : memref<64x128xf32, #tpu.memory_space<vmem>>, vector<1x128xf32>
    %c3_i32 = arith.constant 3 : i32
    %18 = arith.addi %0, %c3_i32 : i32
    %c0_9 = arith.constant 0 : index
    %19 = arith.index_cast %18 : i32 to index
    %20 = memref.load %arg1[%c0_9, %19] : memref<8x8xi32, #tpu.memory_space<smem>>
    %21 = arith.index_cast %20 : i32 to index
    %c0_10 = arith.constant 0 : index
    %22 = vector.load %arg2[%21, %c0_10] : memref<64x128xf32, #tpu.memory_space<vmem>>, vector<1x128xf32>
    %c4_i32 = arith.constant 4 : i32
    %23 = arith.addi %0, %c4_i32 : i32
    %c0_11 = arith.constant 0 : index
    %24 = arith.index_cast %23 : i32 to index
    %25 = memref.load %arg1[%c0_11, %24] : memref<8x8xi32, #tpu.memory_space<smem>>
    %26 = arith.index_cast %25 : i32 to index
    %c0_12 = arith.constant 0 : index
    %27 = vector.load %arg2[%26, %c0_12] : memref<64x128xf32, #tpu.memory_space<vmem>>, vector<1x128xf32>
    %c5_i32 = arith.constant 5 : i32
    %28 = arith.addi %0, %c5_i32 : i32
    %c0_13 = arith.constant 0 : index
    %29 = arith.index_cast %28 : i32 to index
    %30 = memref.load %arg1[%c0_13, %29] : memref<8x8xi32, #tpu.memory_space<smem>>
    %31 = arith.index_cast %30 : i32 to index
    %c0_14 = arith.constant 0 : index
    %32 = vector.load %arg2[%31, %c0_14] : memref<64x128xf32, #tpu.memory_space<vmem>>, vector<1x128xf32>
    %c6_i32 = arith.constant 6 : i32
    %33 = arith.addi %0, %c6_i32 : i32
    %c0_15 = arith.constant 0 : index
    %34 = arith.index_cast %33 : i32 to index
    %35 = memref.load %arg1[%c0_15, %34] : memref<8x8xi32, #tpu.memory_space<smem>>
    %36 = arith.index_cast %35 : i32 to index
    %c0_16 = arith.constant 0 : index
    %37 = vector.load %arg2[%36, %c0_16] : memref<64x128xf32, #tpu.memory_space<vmem>>, vector<1x128xf32>
    %c7_i32 = arith.constant 7 : i32
    %38 = arith.addi %0, %c7_i32 : i32
    %c0_17 = arith.constant 0 : index
    %39 = arith.index_cast %38 : i32 to index
    %40 = memref.load %arg1[%c0_17, %39] : memref<8x8xi32, #tpu.memory_space<smem>>
    %41 = arith.index_cast %40 : i32 to index
    %c0_18 = arith.constant 0 : index
    %42 = vector.load %arg2[%41, %c0_18] : memref<64x128xf32, #tpu.memory_space<vmem>>, vector<1x128xf32>
    %43 = tpu.concatenate %7, %12, %17, %22, %27, %32, %37, %42 in 0 : vector<1x128xf32>, vector<1x128xf32>, vector<1x128xf32>, vector<1x128xf32>, vector<1x128xf32>, vector<1x128xf32>, vector<1x128xf32>, vector<1x128xf32> -> vector<8x128xf32>
    %44 = vector.broadcast %2 : vector<1x128xf32> to vector<8x128xf32>
    %45 = arith.addf %43, %44 : vector<8x128xf32>
    %46 = math.tanh %45 : vector<8x128xf32>
    %c0_i32_19 = arith.constant 0 : i32
    %47 = arith.addi %0, %c0_i32_19 : i32
    %c1 = arith.constant 1 : index
    %48 = arith.index_cast %47 : i32 to index
    %49 = memref.load %arg1[%c1, %48] : memref<8x8xi32, #tpu.memory_space<smem>>
    %50 = arith.index_cast %49 : i32 to index
    %c0_20 = arith.constant 0 : index
    %51 = vector.load %arg2[%50, %c0_20] : memref<64x128xf32, #tpu.memory_space<vmem>>, vector<1x128xf32>
    %c1_i32_21 = arith.constant 1 : i32
    %52 = arith.addi %0, %c1_i32_21 : i32
    %c1_22 = arith.constant 1 : index
    %53 = arith.index_cast %52 : i32 to index
    %54 = memref.load %arg1[%c1_22, %53] : memref<8x8xi32, #tpu.memory_space<smem>>
    %55 = arith.index_cast %54 : i32 to index
    %c0_23 = arith.constant 0 : index
    %56 = vector.load %arg2[%55, %c0_23] : memref<64x128xf32, #tpu.memory_space<vmem>>, vector<1x128xf32>
    %c2_i32_24 = arith.constant 2 : i32
    %57 = arith.addi %0, %c2_i32_24 : i32
    %c1_25 = arith.constant 1 : index
    %58 = arith.index_cast %57 : i32 to index
    %59 = memref.load %arg1[%c1_25, %58] : memref<8x8xi32, #tpu.memory_space<smem>>
    %60 = arith.index_cast %59 : i32 to index
    %c0_26 = arith.constant 0 : index
    %61 = vector.load %arg2[%60, %c0_26] : memref<64x128xf32, #tpu.memory_space<vmem>>, vector<1x128xf32>
    %c3_i32_27 = arith.constant 3 : i32
    %62 = arith.addi %0, %c3_i32_27 : i32
    %c1_28 = arith.constant 1 : index
    %63 = arith.index_cast %62 : i32 to index
    %64 = memref.load %arg1[%c1_28, %63] : memref<8x8xi32, #tpu.memory_space<smem>>
    %65 = arith.index_cast %64 : i32 to index
    %c0_29 = arith.constant 0 : index
    %66 = vector.load %arg2[%65, %c0_29] : memref<64x128xf32, #tpu.memory_space<vmem>>, vector<1x128xf32>
    %c4_i32_30 = arith.constant 4 : i32
    %67 = arith.addi %0, %c4_i32_30 : i32
    %c1_31 = arith.constant 1 : index
    %68 = arith.index_cast %67 : i32 to index
    %69 = memref.load %arg1[%c1_31, %68] : memref<8x8xi32, #tpu.memory_space<smem>>
    %70 = arith.index_cast %69 : i32 to index
    %c0_32 = arith.constant 0 : index
    %71 = vector.load %arg2[%70, %c0_32] : memref<64x128xf32, #tpu.memory_space<vmem>>, vector<1x128xf32>
    %c5_i32_33 = arith.constant 5 : i32
    %72 = arith.addi %0, %c5_i32_33 : i32
    %c1_34 = arith.constant 1 : index
    %73 = arith.index_cast %72 : i32 to index
    %74 = memref.load %arg1[%c1_34, %73] : memref<8x8xi32, #tpu.memory_space<smem>>
    %75 = arith.index_cast %74 : i32 to index
    %c0_35 = arith.constant 0 : index
    %76 = vector.load %arg2[%75, %c0_35] : memref<64x128xf32, #tpu.memory_space<vmem>>, vector<1x128xf32>
    %c6_i32_36 = arith.constant 6 : i32
    %77 = arith.addi %0, %c6_i32_36 : i32
    %c1_37 = arith.constant 1 : index
    %78 = arith.index_cast %77 : i32 to index
    %79 = memref.load %arg1[%c1_37, %78] : memref<8x8xi32, #tpu.memory_space<smem>>
    %80 = arith.index_cast %79 : i32 to index
    %c0_38 = arith.constant 0 : index
    %81 = vector.load %arg2[%80, %c0_38] : memref<64x128xf32, #tpu.memory_space<vmem>>, vector<1x128xf32>
    %c7_i32_39 = arith.constant 7 : i32
    %82 = arith.addi %0, %c7_i32_39 : i32
    %c1_40 = arith.constant 1 : index
    %83 = arith.index_cast %82 : i32 to index
    %84 = memref.load %arg1[%c1_40, %83] : memref<8x8xi32, #tpu.memory_space<smem>>
    %85 = arith.index_cast %84 : i32 to index
    %c0_41 = arith.constant 0 : index
    %86 = vector.load %arg2[%85, %c0_41] : memref<64x128xf32, #tpu.memory_space<vmem>>, vector<1x128xf32>
    %87 = tpu.concatenate %51, %56, %61, %66, %71, %76, %81, %86 in 0 : vector<1x128xf32>, vector<1x128xf32>, vector<1x128xf32>, vector<1x128xf32>, vector<1x128xf32>, vector<1x128xf32>, vector<1x128xf32>, vector<1x128xf32> -> vector<8x128xf32>
    %88 = vector.broadcast %2 : vector<1x128xf32> to vector<8x128xf32>
    %89 = arith.addf %87, %88 : vector<8x128xf32>
    %cst = arith.constant dense<0.000000e+00> : vector<8x128xf32>
    %90 = tpu.matmul %46, %1, %cst {dimension_numbers = #tpu.dot_dimension_numbers<[1], [0], [0], [1], [0, 0, 1, 1], [], []>} : vector<8x128xf32>, vector<128x128xf32>, vector<8x128xf32> -> vector<8x128xf32>
    %91 = arith.addf %89, %90 : vector<8x128xf32>
    %92 = math.tanh %91 : vector<8x128xf32>
    %c0_i32_42 = arith.constant 0 : i32
    %93 = arith.addi %0, %c0_i32_42 : i32
    %c2 = arith.constant 2 : index
    %94 = arith.index_cast %93 : i32 to index
    %95 = memref.load %arg1[%c2, %94] : memref<8x8xi32, #tpu.memory_space<smem>>
    %96 = arith.index_cast %95 : i32 to index
    %c0_43 = arith.constant 0 : index
    %97 = vector.load %arg2[%96, %c0_43] : memref<64x128xf32, #tpu.memory_space<vmem>>, vector<1x128xf32>
    %c1_i32_44 = arith.constant 1 : i32
    %98 = arith.addi %0, %c1_i32_44 : i32
    %c2_45 = arith.constant 2 : index
    %99 = arith.index_cast %98 : i32 to index
    %100 = memref.load %arg1[%c2_45, %99] : memref<8x8xi32, #tpu.memory_space<smem>>
    %101 = arith.index_cast %100 : i32 to index
    %c0_46 = arith.constant 0 : index
    %102 = vector.load %arg2[%101, %c0_46] : memref<64x128xf32, #tpu.memory_space<vmem>>, vector<1x128xf32>
    %c2_i32_47 = arith.constant 2 : i32
    %103 = arith.addi %0, %c2_i32_47 : i32
    %c2_48 = arith.constant 2 : index
    %104 = arith.index_cast %103 : i32 to index
    %105 = memref.load %arg1[%c2_48, %104] : memref<8x8xi32, #tpu.memory_space<smem>>
    %106 = arith.index_cast %105 : i32 to index
    %c0_49 = arith.constant 0 : index
    %107 = vector.load %arg2[%106, %c0_49] : memref<64x128xf32, #tpu.memory_space<vmem>>, vector<1x128xf32>
    %c3_i32_50 = arith.constant 3 : i32
    %108 = arith.addi %0, %c3_i32_50 : i32
    %c2_51 = arith.constant 2 : index
    %109 = arith.index_cast %108 : i32 to index
    %110 = memref.load %arg1[%c2_51, %109] : memref<8x8xi32, #tpu.memory_space<smem>>
    %111 = arith.index_cast %110 : i32 to index
    %c0_52 = arith.constant 0 : index
    %112 = vector.load %arg2[%111, %c0_52] : memref<64x128xf32, #tpu.memory_space<vmem>>, vector<1x128xf32>
    %c4_i32_53 = arith.constant 4 : i32
    %113 = arith.addi %0, %c4_i32_53 : i32
    %c2_54 = arith.constant 2 : index
    %114 = arith.index_cast %113 : i32 to index
    %115 = memref.load %arg1[%c2_54, %114] : memref<8x8xi32, #tpu.memory_space<smem>>
    %116 = arith.index_cast %115 : i32 to index
    %c0_55 = arith.constant 0 : index
    %117 = vector.load %arg2[%116, %c0_55] : memref<64x128xf32, #tpu.memory_space<vmem>>, vector<1x128xf32>
    %c5_i32_56 = arith.constant 5 : i32
    %118 = arith.addi %0, %c5_i32_56 : i32
    %c2_57 = arith.constant 2 : index
    %119 = arith.index_cast %118 : i32 to index
    %120 = memref.load %arg1[%c2_57, %119] : memref<8x8xi32, #tpu.memory_space<smem>>
    %121 = arith.index_cast %120 : i32 to index
    %c0_58 = arith.constant 0 : index
    %122 = vector.load %arg2[%121, %c0_58] : memref<64x128xf32, #tpu.memory_space<vmem>>, vector<1x128xf32>
    %c6_i32_59 = arith.constant 6 : i32
    %123 = arith.addi %0, %c6_i32_59 : i32
    %c2_60 = arith.constant 2 : index
    %124 = arith.index_cast %123 : i32 to index
    %125 = memref.load %arg1[%c2_60, %124] : memref<8x8xi32, #tpu.memory_space<smem>>
    %126 = arith.index_cast %125 : i32 to index
    %c0_61 = arith.constant 0 : index
    %127 = vector.load %arg2[%126, %c0_61] : memref<64x128xf32, #tpu.memory_space<vmem>>, vector<1x128xf32>
    %c7_i32_62 = arith.constant 7 : i32
    %128 = arith.addi %0, %c7_i32_62 : i32
    %c2_63 = arith.constant 2 : index
    %129 = arith.index_cast %128 : i32 to index
    %130 = memref.load %arg1[%c2_63, %129] : memref<8x8xi32, #tpu.memory_space<smem>>
    %131 = arith.index_cast %130 : i32 to index
    %c0_64 = arith.constant 0 : index
    %132 = vector.load %arg2[%131, %c0_64] : memref<64x128xf32, #tpu.memory_space<vmem>>, vector<1x128xf32>
    %133 = tpu.concatenate %97, %102, %107, %112, %117, %122, %127, %132 in 0 : vector<1x128xf32>, vector<1x128xf32>, vector<1x128xf32>, vector<1x128xf32>, vector<1x128xf32>, vector<1x128xf32>, vector<1x128xf32>, vector<1x128xf32> -> vector<8x128xf32>
    %134 = vector.broadcast %2 : vector<1x128xf32> to vector<8x128xf32>
    %135 = arith.addf %133, %134 : vector<8x128xf32>
    %cst_65 = arith.constant dense<0.000000e+00> : vector<8x128xf32>
    %136 = tpu.matmul %92, %1, %cst_65 {dimension_numbers = #tpu.dot_dimension_numbers<[1], [0], [0], [1], [0, 0, 1, 1], [], []>} : vector<8x128xf32>, vector<128x128xf32>, vector<8x128xf32> -> vector<8x128xf32>
    %137 = arith.addf %135, %136 : vector<8x128xf32>
    %138 = math.tanh %137 : vector<8x128xf32>
    %c0_i32_66 = arith.constant 0 : i32
    %139 = arith.addi %0, %c0_i32_66 : i32
    %c3 = arith.constant 3 : index
    %140 = arith.index_cast %139 : i32 to index
    %141 = memref.load %arg1[%c3, %140] : memref<8x8xi32, #tpu.memory_space<smem>>
    %142 = arith.index_cast %141 : i32 to index
    %c0_67 = arith.constant 0 : index
    %143 = vector.load %arg2[%142, %c0_67] : memref<64x128xf32, #tpu.memory_space<vmem>>, vector<1x128xf32>
    %c1_i32_68 = arith.constant 1 : i32
    %144 = arith.addi %0, %c1_i32_68 : i32
    %c3_69 = arith.constant 3 : index
    %145 = arith.index_cast %144 : i32 to index
    %146 = memref.load %arg1[%c3_69, %145] : memref<8x8xi32, #tpu.memory_space<smem>>
    %147 = arith.index_cast %146 : i32 to index
    %c0_70 = arith.constant 0 : index
    %148 = vector.load %arg2[%147, %c0_70] : memref<64x128xf32, #tpu.memory_space<vmem>>, vector<1x128xf32>
    %c2_i32_71 = arith.constant 2 : i32
    %149 = arith.addi %0, %c2_i32_71 : i32
    %c3_72 = arith.constant 3 : index
    %150 = arith.index_cast %149 : i32 to index
    %151 = memref.load %arg1[%c3_72, %150] : memref<8x8xi32, #tpu.memory_space<smem>>
    %152 = arith.index_cast %151 : i32 to index
    %c0_73 = arith.constant 0 : index
    %153 = vector.load %arg2[%152, %c0_73] : memref<64x128xf32, #tpu.memory_space<vmem>>, vector<1x128xf32>
    %c3_i32_74 = arith.constant 3 : i32
    %154 = arith.addi %0, %c3_i32_74 : i32
    %c3_75 = arith.constant 3 : index
    %155 = arith.index_cast %154 : i32 to index
    %156 = memref.load %arg1[%c3_75, %155] : memref<8x8xi32, #tpu.memory_space<smem>>
    %157 = arith.index_cast %156 : i32 to index
    %c0_76 = arith.constant 0 : index
    %158 = vector.load %arg2[%157, %c0_76] : memref<64x128xf32, #tpu.memory_space<vmem>>, vector<1x128xf32>
    %c4_i32_77 = arith.constant 4 : i32
    %159 = arith.addi %0, %c4_i32_77 : i32
    %c3_78 = arith.constant 3 : index
    %160 = arith.index_cast %159 : i32 to index
    %161 = memref.load %arg1[%c3_78, %160] : memref<8x8xi32, #tpu.memory_space<smem>>
    %162 = arith.index_cast %161 : i32 to index
    %c0_79 = arith.constant 0 : index
    %163 = vector.load %arg2[%162, %c0_79] : memref<64x128xf32, #tpu.memory_space<vmem>>, vector<1x128xf32>
    %c5_i32_80 = arith.constant 5 : i32
    %164 = arith.addi %0, %c5_i32_80 : i32
    %c3_81 = arith.constant 3 : index
    %165 = arith.index_cast %164 : i32 to index
    %166 = memref.load %arg1[%c3_81, %165] : memref<8x8xi32, #tpu.memory_space<smem>>
    %167 = arith.index_cast %166 : i32 to index
    %c0_82 = arith.constant 0 : index
    %168 = vector.load %arg2[%167, %c0_82] : memref<64x128xf32, #tpu.memory_space<vmem>>, vector<1x128xf32>
    %c6_i32_83 = arith.constant 6 : i32
    %169 = arith.addi %0, %c6_i32_83 : i32
    %c3_84 = arith.constant 3 : index
    %170 = arith.index_cast %169 : i32 to index
    %171 = memref.load %arg1[%c3_84, %170] : memref<8x8xi32, #tpu.memory_space<smem>>
    %172 = arith.index_cast %171 : i32 to index
    %c0_85 = arith.constant 0 : index
    %173 = vector.load %arg2[%172, %c0_85] : memref<64x128xf32, #tpu.memory_space<vmem>>, vector<1x128xf32>
    %c7_i32_86 = arith.constant 7 : i32
    %174 = arith.addi %0, %c7_i32_86 : i32
    %c3_87 = arith.constant 3 : index
    %175 = arith.index_cast %174 : i32 to index
    %176 = memref.load %arg1[%c3_87, %175] : memref<8x8xi32, #tpu.memory_space<smem>>
    %177 = arith.index_cast %176 : i32 to index
    %c0_88 = arith.constant 0 : index
    %178 = vector.load %arg2[%177, %c0_88] : memref<64x128xf32, #tpu.memory_space<vmem>>, vector<1x128xf32>
    %179 = tpu.concatenate %143, %148, %153, %158, %163, %168, %173, %178 in 0 : vector<1x128xf32>, vector<1x128xf32>, vector<1x128xf32>, vector<1x128xf32>, vector<1x128xf32>, vector<1x128xf32>, vector<1x128xf32>, vector<1x128xf32> -> vector<8x128xf32>
    %180 = vector.broadcast %2 : vector<1x128xf32> to vector<8x128xf32>
    %181 = arith.addf %179, %180 : vector<8x128xf32>
    %cst_89 = arith.constant dense<0.000000e+00> : vector<8x128xf32>
    %182 = tpu.matmul %138, %1, %cst_89 {dimension_numbers = #tpu.dot_dimension_numbers<[1], [0], [0], [1], [0, 0, 1, 1], [], []>} : vector<8x128xf32>, vector<128x128xf32>, vector<8x128xf32> -> vector<8x128xf32>
    %183 = arith.addf %181, %182 : vector<8x128xf32>
    %184 = math.tanh %183 : vector<8x128xf32>
    %c0_i32_90 = arith.constant 0 : i32
    %185 = arith.addi %0, %c0_i32_90 : i32
    %c4 = arith.constant 4 : index
    %186 = arith.index_cast %185 : i32 to index
    %187 = memref.load %arg1[%c4, %186] : memref<8x8xi32, #tpu.memory_space<smem>>
    %188 = arith.index_cast %187 : i32 to index
    %c0_91 = arith.constant 0 : index
    %189 = vector.load %arg2[%188, %c0_91] : memref<64x128xf32, #tpu.memory_space<vmem>>, vector<1x128xf32>
    %c1_i32_92 = arith.constant 1 : i32
    %190 = arith.addi %0, %c1_i32_92 : i32
    %c4_93 = arith.constant 4 : index
    %191 = arith.index_cast %190 : i32 to index
    %192 = memref.load %arg1[%c4_93, %191] : memref<8x8xi32, #tpu.memory_space<smem>>
    %193 = arith.index_cast %192 : i32 to index
    %c0_94 = arith.constant 0 : index
    %194 = vector.load %arg2[%193, %c0_94] : memref<64x128xf32, #tpu.memory_space<vmem>>, vector<1x128xf32>
    %c2_i32_95 = arith.constant 2 : i32
    %195 = arith.addi %0, %c2_i32_95 : i32
    %c4_96 = arith.constant 4 : index
    %196 = arith.index_cast %195 : i32 to index
    %197 = memref.load %arg1[%c4_96, %196] : memref<8x8xi32, #tpu.memory_space<smem>>
    %198 = arith.index_cast %197 : i32 to index
    %c0_97 = arith.constant 0 : index
    %199 = vector.load %arg2[%198, %c0_97] : memref<64x128xf32, #tpu.memory_space<vmem>>, vector<1x128xf32>
    %c3_i32_98 = arith.constant 3 : i32
    %200 = arith.addi %0, %c3_i32_98 : i32
    %c4_99 = arith.constant 4 : index
    %201 = arith.index_cast %200 : i32 to index
    %202 = memref.load %arg1[%c4_99, %201] : memref<8x8xi32, #tpu.memory_space<smem>>
    %203 = arith.index_cast %202 : i32 to index
    %c0_100 = arith.constant 0 : index
    %204 = vector.load %arg2[%203, %c0_100] : memref<64x128xf32, #tpu.memory_space<vmem>>, vector<1x128xf32>
    %c4_i32_101 = arith.constant 4 : i32
    %205 = arith.addi %0, %c4_i32_101 : i32
    %c4_102 = arith.constant 4 : index
    %206 = arith.index_cast %205 : i32 to index
    %207 = memref.load %arg1[%c4_102, %206] : memref<8x8xi32, #tpu.memory_space<smem>>
    %208 = arith.index_cast %207 : i32 to index
    %c0_103 = arith.constant 0 : index
    %209 = vector.load %arg2[%208, %c0_103] : memref<64x128xf32, #tpu.memory_space<vmem>>, vector<1x128xf32>
    %c5_i32_104 = arith.constant 5 : i32
    %210 = arith.addi %0, %c5_i32_104 : i32
    %c4_105 = arith.constant 4 : index
    %211 = arith.index_cast %210 : i32 to index
    %212 = memref.load %arg1[%c4_105, %211] : memref<8x8xi32, #tpu.memory_space<smem>>
    %213 = arith.index_cast %212 : i32 to index
    %c0_106 = arith.constant 0 : index
    %214 = vector.load %arg2[%213, %c0_106] : memref<64x128xf32, #tpu.memory_space<vmem>>, vector<1x128xf32>
    %c6_i32_107 = arith.constant 6 : i32
    %215 = arith.addi %0, %c6_i32_107 : i32
    %c4_108 = arith.constant 4 : index
    %216 = arith.index_cast %215 : i32 to index
    %217 = memref.load %arg1[%c4_108, %216] : memref<8x8xi32, #tpu.memory_space<smem>>
    %218 = arith.index_cast %217 : i32 to index
    %c0_109 = arith.constant 0 : index
    %219 = vector.load %arg2[%218, %c0_109] : memref<64x128xf32, #tpu.memory_space<vmem>>, vector<1x128xf32>
    %c7_i32_110 = arith.constant 7 : i32
    %220 = arith.addi %0, %c7_i32_110 : i32
    %c4_111 = arith.constant 4 : index
    %221 = arith.index_cast %220 : i32 to index
    %222 = memref.load %arg1[%c4_111, %221] : memref<8x8xi32, #tpu.memory_space<smem>>
    %223 = arith.index_cast %222 : i32 to index
    %c0_112 = arith.constant 0 : index
    %224 = vector.load %arg2[%223, %c0_112] : memref<64x128xf32, #tpu.memory_space<vmem>>, vector<1x128xf32>
    %225 = tpu.concatenate %189, %194, %199, %204, %209, %214, %219, %224 in 0 : vector<1x128xf32>, vector<1x128xf32>, vector<1x128xf32>, vector<1x128xf32>, vector<1x128xf32>, vector<1x128xf32>, vector<1x128xf32>, vector<1x128xf32> -> vector<8x128xf32>
    %226 = vector.broadcast %2 : vector<1x128xf32> to vector<8x128xf32>
    %227 = arith.addf %225, %226 : vector<8x128xf32>
    %cst_113 = arith.constant dense<0.000000e+00> : vector<8x128xf32>
    %228 = tpu.matmul %184, %1, %cst_113 {dimension_numbers = #tpu.dot_dimension_numbers<[1], [0], [0], [1], [0, 0, 1, 1], [], []>} : vector<8x128xf32>, vector<128x128xf32>, vector<8x128xf32> -> vector<8x128xf32>
    %229 = arith.addf %227, %228 : vector<8x128xf32>
    %230 = math.tanh %229 : vector<8x128xf32>
    %c0_i32_114 = arith.constant 0 : i32
    %231 = arith.addi %0, %c0_i32_114 : i32
    %c5 = arith.constant 5 : index
    %232 = arith.index_cast %231 : i32 to index
    %233 = memref.load %arg1[%c5, %232] : memref<8x8xi32, #tpu.memory_space<smem>>
    %234 = arith.index_cast %233 : i32 to index
    %c0_115 = arith.constant 0 : index
    %235 = vector.load %arg2[%234, %c0_115] : memref<64x128xf32, #tpu.memory_space<vmem>>, vector<1x128xf32>
    %c1_i32_116 = arith.constant 1 : i32
    %236 = arith.addi %0, %c1_i32_116 : i32
    %c5_117 = arith.constant 5 : index
    %237 = arith.index_cast %236 : i32 to index
    %238 = memref.load %arg1[%c5_117, %237] : memref<8x8xi32, #tpu.memory_space<smem>>
    %239 = arith.index_cast %238 : i32 to index
    %c0_118 = arith.constant 0 : index
    %240 = vector.load %arg2[%239, %c0_118] : memref<64x128xf32, #tpu.memory_space<vmem>>, vector<1x128xf32>
    %c2_i32_119 = arith.constant 2 : i32
    %241 = arith.addi %0, %c2_i32_119 : i32
    %c5_120 = arith.constant 5 : index
    %242 = arith.index_cast %241 : i32 to index
    %243 = memref.load %arg1[%c5_120, %242] : memref<8x8xi32, #tpu.memory_space<smem>>
    %244 = arith.index_cast %243 : i32 to index
    %c0_121 = arith.constant 0 : index
    %245 = vector.load %arg2[%244, %c0_121] : memref<64x128xf32, #tpu.memory_space<vmem>>, vector<1x128xf32>
    %c3_i32_122 = arith.constant 3 : i32
    %246 = arith.addi %0, %c3_i32_122 : i32
    %c5_123 = arith.constant 5 : index
    %247 = arith.index_cast %246 : i32 to index
    %248 = memref.load %arg1[%c5_123, %247] : memref<8x8xi32, #tpu.memory_space<smem>>
    %249 = arith.index_cast %248 : i32 to index
    %c0_124 = arith.constant 0 : index
    %250 = vector.load %arg2[%249, %c0_124] : memref<64x128xf32, #tpu.memory_space<vmem>>, vector<1x128xf32>
    %c4_i32_125 = arith.constant 4 : i32
    %251 = arith.addi %0, %c4_i32_125 : i32
    %c5_126 = arith.constant 5 : index
    %252 = arith.index_cast %251 : i32 to index
    %253 = memref.load %arg1[%c5_126, %252] : memref<8x8xi32, #tpu.memory_space<smem>>
    %254 = arith.index_cast %253 : i32 to index
    %c0_127 = arith.constant 0 : index
    %255 = vector.load %arg2[%254, %c0_127] : memref<64x128xf32, #tpu.memory_space<vmem>>, vector<1x128xf32>
    %c5_i32_128 = arith.constant 5 : i32
    %256 = arith.addi %0, %c5_i32_128 : i32
    %c5_129 = arith.constant 5 : index
    %257 = arith.index_cast %256 : i32 to index
    %258 = memref.load %arg1[%c5_129, %257] : memref<8x8xi32, #tpu.memory_space<smem>>
    %259 = arith.index_cast %258 : i32 to index
    %c0_130 = arith.constant 0 : index
    %260 = vector.load %arg2[%259, %c0_130] : memref<64x128xf32, #tpu.memory_space<vmem>>, vector<1x128xf32>
    %c6_i32_131 = arith.constant 6 : i32
    %261 = arith.addi %0, %c6_i32_131 : i32
    %c5_132 = arith.constant 5 : index
    %262 = arith.index_cast %261 : i32 to index
    %263 = memref.load %arg1[%c5_132, %262] : memref<8x8xi32, #tpu.memory_space<smem>>
    %264 = arith.index_cast %263 : i32 to index
    %c0_133 = arith.constant 0 : index
    %265 = vector.load %arg2[%264, %c0_133] : memref<64x128xf32, #tpu.memory_space<vmem>>, vector<1x128xf32>
    %c7_i32_134 = arith.constant 7 : i32
    %266 = arith.addi %0, %c7_i32_134 : i32
    %c5_135 = arith.constant 5 : index
    %267 = arith.index_cast %266 : i32 to index
    %268 = memref.load %arg1[%c5_135, %267] : memref<8x8xi32, #tpu.memory_space<smem>>
    %269 = arith.index_cast %268 : i32 to index
    %c0_136 = arith.constant 0 : index
    %270 = vector.load %arg2[%269, %c0_136] : memref<64x128xf32, #tpu.memory_space<vmem>>, vector<1x128xf32>
    %271 = tpu.concatenate %235, %240, %245, %250, %255, %260, %265, %270 in 0 : vector<1x128xf32>, vector<1x128xf32>, vector<1x128xf32>, vector<1x128xf32>, vector<1x128xf32>, vector<1x128xf32>, vector<1x128xf32>, vector<1x128xf32> -> vector<8x128xf32>
    %272 = vector.broadcast %2 : vector<1x128xf32> to vector<8x128xf32>
    %273 = arith.addf %271, %272 : vector<8x128xf32>
    %cst_137 = arith.constant dense<0.000000e+00> : vector<8x128xf32>
    %274 = tpu.matmul %230, %1, %cst_137 {dimension_numbers = #tpu.dot_dimension_numbers<[1], [0], [0], [1], [0, 0, 1, 1], [], []>} : vector<8x128xf32>, vector<128x128xf32>, vector<8x128xf32> -> vector<8x128xf32>
    %275 = arith.addf %273, %274 : vector<8x128xf32>
    %276 = math.tanh %275 : vector<8x128xf32>
    %c0_i32_138 = arith.constant 0 : i32
    %277 = arith.addi %0, %c0_i32_138 : i32
    %c6 = arith.constant 6 : index
    %278 = arith.index_cast %277 : i32 to index
    %279 = memref.load %arg1[%c6, %278] : memref<8x8xi32, #tpu.memory_space<smem>>
    %280 = arith.index_cast %279 : i32 to index
    %c0_139 = arith.constant 0 : index
    %281 = vector.load %arg2[%280, %c0_139] : memref<64x128xf32, #tpu.memory_space<vmem>>, vector<1x128xf32>
    %c1_i32_140 = arith.constant 1 : i32
    %282 = arith.addi %0, %c1_i32_140 : i32
    %c6_141 = arith.constant 6 : index
    %283 = arith.index_cast %282 : i32 to index
    %284 = memref.load %arg1[%c6_141, %283] : memref<8x8xi32, #tpu.memory_space<smem>>
    %285 = arith.index_cast %284 : i32 to index
    %c0_142 = arith.constant 0 : index
    %286 = vector.load %arg2[%285, %c0_142] : memref<64x128xf32, #tpu.memory_space<vmem>>, vector<1x128xf32>
    %c2_i32_143 = arith.constant 2 : i32
    %287 = arith.addi %0, %c2_i32_143 : i32
    %c6_144 = arith.constant 6 : index
    %288 = arith.index_cast %287 : i32 to index
    %289 = memref.load %arg1[%c6_144, %288] : memref<8x8xi32, #tpu.memory_space<smem>>
    %290 = arith.index_cast %289 : i32 to index
    %c0_145 = arith.constant 0 : index
    %291 = vector.load %arg2[%290, %c0_145] : memref<64x128xf32, #tpu.memory_space<vmem>>, vector<1x128xf32>
    %c3_i32_146 = arith.constant 3 : i32
    %292 = arith.addi %0, %c3_i32_146 : i32
    %c6_147 = arith.constant 6 : index
    %293 = arith.index_cast %292 : i32 to index
    %294 = memref.load %arg1[%c6_147, %293] : memref<8x8xi32, #tpu.memory_space<smem>>
    %295 = arith.index_cast %294 : i32 to index
    %c0_148 = arith.constant 0 : index
    %296 = vector.load %arg2[%295, %c0_148] : memref<64x128xf32, #tpu.memory_space<vmem>>, vector<1x128xf32>
    %c4_i32_149 = arith.constant 4 : i32
    %297 = arith.addi %0, %c4_i32_149 : i32
    %c6_150 = arith.constant 6 : index
    %298 = arith.index_cast %297 : i32 to index
    %299 = memref.load %arg1[%c6_150, %298] : memref<8x8xi32, #tpu.memory_space<smem>>
    %300 = arith.index_cast %299 : i32 to index
    %c0_151 = arith.constant 0 : index
    %301 = vector.load %arg2[%300, %c0_151] : memref<64x128xf32, #tpu.memory_space<vmem>>, vector<1x128xf32>
    %c5_i32_152 = arith.constant 5 : i32
    %302 = arith.addi %0, %c5_i32_152 : i32
    %c6_153 = arith.constant 6 : index
    %303 = arith.index_cast %302 : i32 to index
    %304 = memref.load %arg1[%c6_153, %303] : memref<8x8xi32, #tpu.memory_space<smem>>
    %305 = arith.index_cast %304 : i32 to index
    %c0_154 = arith.constant 0 : index
    %306 = vector.load %arg2[%305, %c0_154] : memref<64x128xf32, #tpu.memory_space<vmem>>, vector<1x128xf32>
    %c6_i32_155 = arith.constant 6 : i32
    %307 = arith.addi %0, %c6_i32_155 : i32
    %c6_156 = arith.constant 6 : index
    %308 = arith.index_cast %307 : i32 to index
    %309 = memref.load %arg1[%c6_156, %308] : memref<8x8xi32, #tpu.memory_space<smem>>
    %310 = arith.index_cast %309 : i32 to index
    %c0_157 = arith.constant 0 : index
    %311 = vector.load %arg2[%310, %c0_157] : memref<64x128xf32, #tpu.memory_space<vmem>>, vector<1x128xf32>
    %c7_i32_158 = arith.constant 7 : i32
    %312 = arith.addi %0, %c7_i32_158 : i32
    %c6_159 = arith.constant 6 : index
    %313 = arith.index_cast %312 : i32 to index
    %314 = memref.load %arg1[%c6_159, %313] : memref<8x8xi32, #tpu.memory_space<smem>>
    %315 = arith.index_cast %314 : i32 to index
    %c0_160 = arith.constant 0 : index
    %316 = vector.load %arg2[%315, %c0_160] : memref<64x128xf32, #tpu.memory_space<vmem>>, vector<1x128xf32>
    %317 = tpu.concatenate %281, %286, %291, %296, %301, %306, %311, %316 in 0 : vector<1x128xf32>, vector<1x128xf32>, vector<1x128xf32>, vector<1x128xf32>, vector<1x128xf32>, vector<1x128xf32>, vector<1x128xf32>, vector<1x128xf32> -> vector<8x128xf32>
    %318 = vector.broadcast %2 : vector<1x128xf32> to vector<8x128xf32>
    %319 = arith.addf %317, %318 : vector<8x128xf32>
    %cst_161 = arith.constant dense<0.000000e+00> : vector<8x128xf32>
    %320 = tpu.matmul %276, %1, %cst_161 {dimension_numbers = #tpu.dot_dimension_numbers<[1], [0], [0], [1], [0, 0, 1, 1], [], []>} : vector<8x128xf32>, vector<128x128xf32>, vector<8x128xf32> -> vector<8x128xf32>
    %321 = arith.addf %319, %320 : vector<8x128xf32>
    %322 = math.tanh %321 : vector<8x128xf32>
    %c0_i32_162 = arith.constant 0 : i32
    %323 = arith.addi %0, %c0_i32_162 : i32
    %c7 = arith.constant 7 : index
    %324 = arith.index_cast %323 : i32 to index
    %325 = memref.load %arg1[%c7, %324] : memref<8x8xi32, #tpu.memory_space<smem>>
    %326 = arith.index_cast %325 : i32 to index
    %c0_163 = arith.constant 0 : index
    %327 = vector.load %arg2[%326, %c0_163] : memref<64x128xf32, #tpu.memory_space<vmem>>, vector<1x128xf32>
    %c1_i32_164 = arith.constant 1 : i32
    %328 = arith.addi %0, %c1_i32_164 : i32
    %c7_165 = arith.constant 7 : index
    %329 = arith.index_cast %328 : i32 to index
    %330 = memref.load %arg1[%c7_165, %329] : memref<8x8xi32, #tpu.memory_space<smem>>
    %331 = arith.index_cast %330 : i32 to index
    %c0_166 = arith.constant 0 : index
    %332 = vector.load %arg2[%331, %c0_166] : memref<64x128xf32, #tpu.memory_space<vmem>>, vector<1x128xf32>
    %c2_i32_167 = arith.constant 2 : i32
    %333 = arith.addi %0, %c2_i32_167 : i32
    %c7_168 = arith.constant 7 : index
    %334 = arith.index_cast %333 : i32 to index
    %335 = memref.load %arg1[%c7_168, %334] : memref<8x8xi32, #tpu.memory_space<smem>>
    %336 = arith.index_cast %335 : i32 to index
    %c0_169 = arith.constant 0 : index
    %337 = vector.load %arg2[%336, %c0_169] : memref<64x128xf32, #tpu.memory_space<vmem>>, vector<1x128xf32>
    %c3_i32_170 = arith.constant 3 : i32
    %338 = arith.addi %0, %c3_i32_170 : i32
    %c7_171 = arith.constant 7 : index
    %339 = arith.index_cast %338 : i32 to index
    %340 = memref.load %arg1[%c7_171, %339] : memref<8x8xi32, #tpu.memory_space<smem>>
    %341 = arith.index_cast %340 : i32 to index
    %c0_172 = arith.constant 0 : index
    %342 = vector.load %arg2[%341, %c0_172] : memref<64x128xf32, #tpu.memory_space<vmem>>, vector<1x128xf32>
    %c4_i32_173 = arith.constant 4 : i32
    %343 = arith.addi %0, %c4_i32_173 : i32
    %c7_174 = arith.constant 7 : index
    %344 = arith.index_cast %343 : i32 to index
    %345 = memref.load %arg1[%c7_174, %344] : memref<8x8xi32, #tpu.memory_space<smem>>
    %346 = arith.index_cast %345 : i32 to index
    %c0_175 = arith.constant 0 : index
    %347 = vector.load %arg2[%346, %c0_175] : memref<64x128xf32, #tpu.memory_space<vmem>>, vector<1x128xf32>
    %c5_i32_176 = arith.constant 5 : i32
    %348 = arith.addi %0, %c5_i32_176 : i32
    %c7_177 = arith.constant 7 : index
    %349 = arith.index_cast %348 : i32 to index
    %350 = memref.load %arg1[%c7_177, %349] : memref<8x8xi32, #tpu.memory_space<smem>>
    %351 = arith.index_cast %350 : i32 to index
    %c0_178 = arith.constant 0 : index
    %352 = vector.load %arg2[%351, %c0_178] : memref<64x128xf32, #tpu.memory_space<vmem>>, vector<1x128xf32>
    %c6_i32_179 = arith.constant 6 : i32
    %353 = arith.addi %0, %c6_i32_179 : i32
    %c7_180 = arith.constant 7 : index
    %354 = arith.index_cast %353 : i32 to index
    %355 = memref.load %arg1[%c7_180, %354] : memref<8x8xi32, #tpu.memory_space<smem>>
    %356 = arith.index_cast %355 : i32 to index
    %c0_181 = arith.constant 0 : index
    %357 = vector.load %arg2[%356, %c0_181] : memref<64x128xf32, #tpu.memory_space<vmem>>, vector<1x128xf32>
    %c7_i32_182 = arith.constant 7 : i32
    %358 = arith.addi %0, %c7_i32_182 : i32
    %c7_183 = arith.constant 7 : index
    %359 = arith.index_cast %358 : i32 to index
    %360 = memref.load %arg1[%c7_183, %359] : memref<8x8xi32, #tpu.memory_space<smem>>
    %361 = arith.index_cast %360 : i32 to index
    %c0_184 = arith.constant 0 : index
    %362 = vector.load %arg2[%361, %c0_184] : memref<64x128xf32, #tpu.memory_space<vmem>>, vector<1x128xf32>
    %363 = tpu.concatenate %327, %332, %337, %342, %347, %352, %357, %362 in 0 : vector<1x128xf32>, vector<1x128xf32>, vector<1x128xf32>, vector<1x128xf32>, vector<1x128xf32>, vector<1x128xf32>, vector<1x128xf32>, vector<1x128xf32> -> vector<8x128xf32>
    %364 = vector.broadcast %2 : vector<1x128xf32> to vector<8x128xf32>
    %365 = arith.addf %363, %364 : vector<8x128xf32>
    %cst_185 = arith.constant dense<0.000000e+00> : vector<8x128xf32>
    %366 = tpu.matmul %322, %1, %cst_185 {dimension_numbers = #tpu.dot_dimension_numbers<[1], [0], [0], [1], [0, 0, 1, 1], [], []>} : vector<8x128xf32>, vector<128x128xf32>, vector<8x128xf32> -> vector<8x128xf32>
    %367 = arith.addf %365, %366 : vector<8x128xf32>
    %368 = math.tanh %367 : vector<8x128xf32>
    %c0_186 = arith.constant 0 : index
    %c0_187 = arith.constant 0 : index
    %369 = vector.load %arg5[%c0_186, %c0_187] : memref<128x128xf32, #tpu.memory_space<vmem>>, vector<128x128xf32>
    %cst_188 = arith.constant dense<0.000000e+00> : vector<8x128xf32>
    %370 = tpu.matmul %368, %369, %cst_188 {dimension_numbers = #tpu.dot_dimension_numbers<[1], [0], [0], [1], [0, 0, 1, 1], [], []>} : vector<8x128xf32>, vector<128x128xf32>, vector<8x128xf32> -> vector<8x128xf32>
    %c0_189 = arith.constant 0 : index
    %c0_190 = arith.constant 0 : index
    %371 = vector.load %arg6[%c0_189, %c0_190] : memref<1x128xf32, #tpu.memory_space<vmem>>, vector<1x128xf32>
    %372 = vector.broadcast %371 : vector<1x128xf32> to vector<8x128xf32>
    %373 = arith.addf %370, %372 : vector<8x128xf32>
    %374 = tpu.iota {dimensions = array<i32: 1>} : vector<8x128xi32>
    %c18_i32 = arith.constant 18 : i32
    %375 = vector.broadcast %c18_i32 : i32 to vector<8x128xi32>
    %376 = arith.cmpi slt, %374, %375 : vector<8x128xi32>
    %cst_191 = arith.constant -1.000000e+30 : f32
    %377 = vector.broadcast %cst_191 : f32 to vector<8x128xf32>
    %378 = arith.select %376, %373, %377 : vector<8x128xi1>, vector<8x128xf32>
    %cst_192 = arith.constant dense<0xFF800000> : vector<8xf32>
    %379 = vector.multi_reduction <maximumf>, %378, %cst_192 [1] : vector<8x128xf32> to vector<8xf32>
    %380 = vector.shape_cast %379 : vector<8xf32> to vector<8x1xf32>
    %381 = vector.broadcast %380 : vector<8x1xf32> to vector<8x128xf32>
    %382 = arith.subf %378, %381 : vector<8x128xf32>
    %383 = math.exp %382 : vector<8x128xf32>
    %cst_193 = arith.constant dense<0.000000e+00> : vector<8xf32>
    %384 = vector.multi_reduction <add>, %383, %cst_193 [1] : vector<8x128xf32> to vector<8xf32>
    %385 = vector.shape_cast %384 : vector<8xf32> to vector<8x1xf32>
    %386 = math.log %385 : vector<8x1xf32>
    %387 = arith.addf %380, %386 : vector<8x1xf32>
    %388 = vector.broadcast %387 : vector<8x1xf32> to vector<8x128xf32>
    %389 = arith.subf %373, %388 : vector<8x128xf32>
    %cst_194 = arith.constant 0.000000e+00 : f32
    %390 = vector.broadcast %cst_194 : f32 to vector<8x128xf32>
    %391 = arith.select %376, %389, %390 : vector<8x128xi1>, vector<8x128xf32>
    %c0_195 = arith.constant 0 : index
    %c0_196 = arith.constant 0 : index
    %392 = vector.load %arg7[%c0_195, %c0_196] : memref<8x128xf32, #tpu.memory_space<vmem>>, vector<8x128xf32>
    tpu.vector_store %arg7[%c0_195, %c0_196], %391 {strides = array<i32>} : memref<8x128xf32, #tpu.memory_space<vmem>>, vector<8x128xf32>,
    return
  }
  func.func @transform_0(%arg0: i32, %arg1: memref<8x8xi32, #tpu.memory_space<smem>>) -> (i32, i32) {
    %c0_i32 = arith.constant 0 : i32
    %c0_i32_0 = arith.constant 0 : i32
    %c0_i32_1 = arith.constant 0 : i32
    return %c0_i32, %c0_i32_0 : i32, i32
  }
  func.func @transform_1(%arg0: i32, %arg1: memref<8x8xi32, #tpu.memory_space<smem>>) -> (i32, i32) {
    %c0_i32 = arith.constant 0 : i32
    %c0_i32_0 = arith.constant 0 : i32
    %c0_i32_1 = arith.constant 0 : i32
    return %c0_i32, %c0_i32_0 : i32, i32
  }
  func.func @transform_2(%arg0: i32, %arg1: memref<8x8xi32, #tpu.memory_space<smem>>) -> (i32, i32) {
    %c0_i32 = arith.constant 0 : i32
    %c0_i32_0 = arith.constant 0 : i32
    %c0_i32_1 = arith.constant 0 : i32
    return %c0_i32, %c0_i32_0 : i32, i32
  }
  func.func @transform_3(%arg0: i32, %arg1: memref<8x8xi32, #tpu.memory_space<smem>>) -> (i32, i32) {
    %c0_i32 = arith.constant 0 : i32
    %c0_i32_0 = arith.constant 0 : i32
    %c0_i32_1 = arith.constant 0 : i32
    return %c0_i32, %c0_i32_0 : i32, i32
  }
  func.func @transform_4(%arg0: i32, %arg1: memref<8x8xi32, #tpu.memory_space<smem>>) -> (i32, i32) {
    %c0_i32 = arith.constant 0 : i32
    %c0_i32_0 = arith.constant 0 : i32
    %c0_i32_1 = arith.constant 0 : i32
    return %c0_i32, %c0_i32_0 : i32, i32
  }
  func.func @transform_5(%arg0: i32, %arg1: memref<8x8xi32, #tpu.memory_space<smem>>) -> (i32, i32) {
    %c0_i32 = arith.constant 0 : i32
    %c0_i32_0 = arith.constant 0 : i32
    return %arg0, %c0_i32 : i32, i32
  }
}

</mosaic_0001>

<llo_original>
// kernel: tpu_custom_call.1
$region0: #{tpu_custom_call.1}
  #allocation0 [shape = 'u32[]', space=smem, size = 0x4, offset = 0x4, fixed_abs, tag = 'smem constant byte address 0x4 - core index']
  #allocation1 [shape = 'u32[144,128]{1,0:T(1,128)}', space=vmem, size = 0x12000, scoped, tag = 'internal scratch']
  #allocation2 [shape = 's32[1]{0}', space=sflag, size = 0x4, scoped, tag = 'scoped memory for tpu_custom_call.1']
  #allocation3 [shape = 'u8[4096]{0}', space=smem, size = 0x1000, scoped, tag = 'prefetched SMEM operand 0']
  %s0 = inlined_call_operand.hbm [shape: s32[8,8], index: 0, kind: input, shape index: {}]
  %s1 = inlined_call_operand.hbm [shape: f32[64,128], index: 1, kind: input, shape index: {}]
  %s2 = inlined_call_operand.hbm [shape: f32[128,128], index: 2, kind: input, shape index: {}]
  %s3 = inlined_call_operand.vmem [shape: f32[1,128], index: 3, kind: input, shape index: {}]
  %s4 = inlined_call_operand.hbm [shape: f32[128,128], index: 4, kind: input, shape index: {}]
  %s5 = inlined_call_operand.vmem [shape: f32[1,128], index: 5, kind: input, shape index: {}]
  %s6 = inlined_call_operand.hbm [shape: f32[8,128], index: 6, kind: output, shape index: {}]
  %s7 = sld [smem:[#allocation0]]
  $region42: #{tpu_custom_call.1} parent=0
    _
  %s9 = ssub.s32 1, %s7
  %s10 = scalar_select 0, %s9, %s7
  %12 = dma.hbm_to_smem %s0, 128, [#allocation3], [#allocation2]
  %13 = dma.done [#allocation2], 128
  %14 = sfence
  $region1: #{tpu_custom_call.1} parent=0
    #allocation4 [shape = 'u8[32768]{0}', space=vmem, size = 0x8000, scoped, tag = 'input window, operand 1, single buffered']
    #allocation5 [shape = 's32[1]{0}', space=sflag, size = 0x4, scoped, tag = 'scoped memory for tpu_custom_call.1']
    #allocation6 [shape = 's32[1]{0}', space=sflag, size = 0x4, scoped, tag = 'scoped memory for tpu_custom_call.1']
    #allocation7 [shape = 'u8[65536]{0}', space=vmem, size = 0x10000, scoped, tag = 'input window, operand 2, single buffered']
    #allocation8 [shape = 's32[1]{0}', space=sflag, size = 0x4, scoped, tag = 'scoped memory for tpu_custom_call.1']
    #allocation9 [shape = 'u8[65536]{0}', space=vmem, size = 0x10000, scoped, tag = 'input window, operand 4, single buffered']
    #allocation10 [shape = 'u8[4096]{0}', space=vmem, size = 0x1000, scoped, tag = 'output window, operand 0, single buffered']
    %15 = vsyncpa [#allocation5], 0
    %16 = vsyncpa [#allocation8], 0
    %17 = vsyncpa [#allocation6], 0
    // Predicated region
    $region2: #{tpu_custom_call.1} parent=1 // pred_check
      _
    $region3: #{tpu_custom_call.1} parent=1 // pred_check_branch
      %19 = sbr.rel (0) target = $region5
    $region4: #{tpu_custom_call.1} parent=1 // pred_region
      %s21 = ssub.s32 1024, 1024
      %22 = vsyncadd [#allocation5], %s21
      %s23 = sshll.u32 [#allocation4], 4
      %s24 = int_to_ptr.vmem [resolvable:$true] %s23
      %29 = dma.hbm_to_vmem [thread:$0]  %s1, 1024, %s24, [#allocation5], 128, 128, 8
    $region5: #{tpu_custom_call.1} parent=1 // pred_fallthru
      _
    // Predicated region
    $region6: #{tpu_custom_call.1} parent=1 // pred_check
      _
    $region7: #{tpu_custom_call.1} parent=1 // pred_check_branch
      %31 = sbr.rel (0) target = $region9
    $region8: #{tpu_custom_call.1} parent=1 // pred_region
      %s33 = ssub.s32 2048, 2048
      %34 = vsyncadd [#allocation8], %s33
      %s35 = sshll.u32 [#allocation7], 4
      %s36 = int_to_ptr.vmem [resolvable:$true] %s35
      %41 = dma.hbm_to_vmem [thread:$0]  %s2, 2048, %s36, [#allocation8], 128, 128, 8
    $region9: #{tpu_custom_call.1} parent=1 // pred_fallthru
      _
    // Predicated region
    $region10: #{tpu_custom_call.1} parent=1 // pred_check
      _
    $region11: #{tpu_custom_call.1} parent=1 // pred_check_branch
      %43 = sbr.rel (0) target = $region13
    $region12: #{tpu_custom_call.1} parent=1 // pred_region
      _
    $region13: #{tpu_custom_call.1} parent=1 // pred_fallthru
      _
    // Predicated region
    $region14: #{tpu_custom_call.1} parent=1 // pred_check
      _
    $region15: #{tpu_custom_call.1} parent=1 // pred_check_branch
      %45 = sbr.rel (0) target = $region17
    $region16: #{tpu_custom_call.1} parent=1 // pred_region
      %s47 = ssub.s32 2048, 2048
      %48 = vsyncadd [#allocation8], %s47
      %s49 = sshll.u32 [#allocation9], 4
      %s50 = int_to_ptr.vmem [resolvable:$true] %s49
      %55 = dma.hbm_to_vmem [thread:$0]  %s4, 2048, %s50, [#allocation8], 128, 128, 8
    $region17: #{tpu_custom_call.1} parent=1 // pred_fallthru
      _
    // Predicated region
    $region18: #{tpu_custom_call.1} parent=1 // pred_check
      _
    $region19: #{tpu_custom_call.1} parent=1 // pred_check_branch
      %57 = sbr.rel (0) target = $region21
    $region20: #{tpu_custom_call.1} parent=1 // pred_region
      _
    $region21: #{tpu_custom_call.1} parent=1 // pred_fallthru
      _
    // Predicated region
    $region22: #{tpu_custom_call.1} parent=1 // pred_check
      _
    $region23: #{tpu_custom_call.1} parent=1 // pred_check_branch
      %59 = sbr.rel (0) target = $region25
    $region24: #{tpu_custom_call.1} parent=1 // pred_region
      %60 = dma.done [#allocation5], 1024
    $region25: #{tpu_custom_call.1} parent=1 // pred_fallthru
      _
    // Predicated region
    $region26: #{tpu_custom_call.1} parent=1 // pred_check
      _
    $region27: #{tpu_custom_call.1} parent=1 // pred_check_branch
      %62 = sbr.rel (0) target = $region29
    $region28: #{tpu_custom_call.1} parent=1 // pred_region
      %63 = dma.done [#allocation8], 2048
    $region29: #{tpu_custom_call.1} parent=1 // pred_fallthru
      _
    // Predicated region
    $region30: #{tpu_custom_call.1} parent=1 // pred_check
      _
    $region31: #{tpu_custom_call.1} parent=1 // pred_check_branch
      %65 = sbr.rel (0) target = $region33
    $region32: #{tpu_custom_call.1} parent=1 // pred_region
      %66 = dma.done [#allocation8], 2048
    $region33: #{tpu_custom_call.1} parent=1 // pred_fallthru
      _
    %s67 = smul.u32 0, 8
    %v68 = vld [vmem:[#allocation7] sm:$0xff]
    %v69 = vld [vmem:[#allocation7 + $0x8] sm:$0xff]
    %v70 = vld [vmem:[#allocation7 + $0x10] sm:$0xff]
    %v71 = vld [vmem:[#allocation7 + $0x18] sm:$0xff]
    %v72 = vld [vmem:[#allocation7 + $0x20] sm:$0xff]
    %v73 = vld [vmem:[#allocation7 + $0x28] sm:$0xff]
    %v74 = vld [vmem:[#allocation7 + $0x30] sm:$0xff]
    %v75 = vld [vmem:[#allocation7 + $0x38] sm:$0xff]
    %v76 = vld [vmem:[#allocation7 + $0x40] sm:$0xff]
    %v77 = vld [vmem:[#allocation7 + $0x48] sm:$0xff]
    %v78 = vld [vmem:[#allocation7 + $0x50] sm:$0xff]
    %v79 = vld [vmem:[#allocation7 + $0x58] sm:$0xff]
    %v80 = vld [vmem:[#allocation7 + $0x60] sm:$0xff]
    %v81 = vld [vmem:[#allocation7 + $0x68] sm:$0xff]
    %v82 = vld [vmem:[#allocation7 + $0x70] sm:$0xff]
    %v83 = vld [vmem:[#allocation7 + $0x78] sm:$0xff]
    %v84 = vld [vmem:[%s3] sm:$0x1]
    %s85 = sld [smem:[#allocation3 + %s67]]
    %s86 = scalar_lea.vmem [#allocation4], %s85
    %v87 = vld [vmem:[%s86] sm:$0x1]
    %s88 = sadd.s32 %s67, 1
    %s89 = sld [smem:[#allocation3 + %s88]]
    %s90 = scalar_lea.vmem [#allocation4], %s89
    %v91 = vld [vmem:[%s90] sm:$0x1]
    %s92 = sadd.s32 %s67, 2
    %s93 = sld [smem:[#allocation3 + %s92]]
    %s94 = scalar_lea.vmem [#allocation4], %s93
    %v95 = vld [vmem:[%s94] sm:$0x1]
    %s96 = sadd.s32 %s67, 3
    %s97 = sld [smem:[#allocation3 + %s96]]
    %s98 = scalar_lea.vmem [#allocation4], %s97
    %v99 = vld [vmem:[%s98] sm:$0x1]
    %s100 = sadd.s32 %s67, 4
    %s101 = sld [smem:[#allocation3 + %s100]]
    %s102 = scalar_lea.vmem [#allocation4], %s101
    %v103 = vld [vmem:[%s102] sm:$0x1]
    %s104 = sadd.s32 %s67, 5
    %s105 = sld [smem:[#allocation3 + %s104]]
    %s106 = scalar_lea.vmem [#allocation4], %s105
    %v107 = vld [vmem:[%s106] sm:$0x1]
    %s108 = sadd.s32 %s67, 6
    %s109 = sld [smem:[#allocation3 + %s108]]
    %s110 = scalar_lea.vmem [#allocation4], %s109
    %v111 = vld [vmem:[%s110] sm:$0x1]
    %s112 = sadd.s32 %s67, 7
    %s113 = sld [smem:[#allocation3 + %s112]]
    %s114 = scalar_lea.vmem [#allocation4], %s113
    %v115 = vld [vmem:[%s114] sm:$0x1]
    %v117 = vrot.slane %v91, 7
    %v120 = vrot.slane %v95, 6
    %v123 = vrot.slane %v99, 5
    %v126 = vrot.slane %v103, 4
    %v129 = vrot.slane %v107, 3
    %v132 = vrot.slane %v111, 2
    %v135 = vrot.slane %v115, 1
    %vm137 = vcmask 1040384
    %v138 = vsel %vm137, %v87, %v117
    %vm139 = vcmask 1041408
    %v140 = vsel %vm139, %v138, %v120
    %vm141 = vcmask 1042432
    %v142 = vsel %vm141, %v140, %v123
    %vm143 = vcmask 1043456
    %v144 = vsel %vm143, %v142, %v126
    %vm145 = vcmask 1044480
    %v146 = vsel %vm145, %v144, %v129
    %vm147 = vcmask 1045504
    %v148 = vsel %vm147, %v146, %v132
    %vm149 = vcmask 1046528
    %v150 = vsel %vm149, %v148, %v135
    %v152 = vlaneseq
    %v153 = vshrl.u32 %v152, 7
    %v154 = vsub.s32 0, %v153
    %v155 = vrot.slane %v84, %v154
    %v157 = vadd.f32 %v150, %v155
    %v158 = vtanh.pop %v157
    %s159 = sshra.s32 %s67, 7
    %s160 = sand.u32 %s67, 127
    %s161 = sadd.s32 %s159, 1
    %s162 = smul.u32 %s161, 128
    %s163 = sshra.s32 %s67, 7
    %s164 = sand.u32 %s67, 127
    %s165 = sadd.s32 %s162, %s164
    %s166 = sld [smem:[#allocation3 + %s165]]
    %s167 = scalar_lea.vmem [#allocation4], %s166
    %v168 = vld [vmem:[%s167] sm:$0x1]
    %s169 = sshra.s32 %s88, 7
    %s170 = sand.u32 %s88, 127
    %s171 = sadd.s32 %s169, 1
    %s172 = smul.u32 %s171, 128
    %s173 = sshra.s32 %s88, 7
    %s174 = sand.u32 %s88, 127
    %s175 = sadd.s32 %s172, %s174
    %s176 = sld [smem:[#allocation3 + %s175]]
    %s177 = scalar_lea.vmem [#allocation4], %s176
    %v178 = vld [vmem:[%s177] sm:$0x1]
    %s179 = sshra.s32 %s92, 7
    %s180 = sand.u32 %s92, 127
    %s181 = sadd.s32 %s179, 1
    %s182 = smul.u32 %s181, 128
    %s183 = sshra.s32 %s92, 7
    %s184 = sand.u32 %s92, 127
    %s185 = sadd.s32 %s182, %s184
    %s186 = sld [smem:[#allocation3 + %s185]]
    %s187 = scalar_lea.vmem [#allocation4], %s186
    %v188 = vld [vmem:[%s187] sm:$0x1]
    %s189 = sshra.s32 %s96, 7
    %s190 = sand.u32 %s96, 127
    %s191 = sadd.s32 %s189, 1
    %s192 = smul.u32 %s191, 128
    %s193 = sshra.s32 %s96, 7
    %s194 = sand.u32 %s96, 127
    %s195 = sadd.s32 %s192, %s194
    %s196 = sld [smem:[#allocation3 + %s195]]
    %s197 = scalar_lea.vmem [#allocation4], %s196
    %v198 = vld [vmem:[%s197] sm:$0x1]
    %s199 = sshra.s32 %s100, 7
    %s200 = sand.u32 %s100, 127
    %s201 = sadd.s32 %s199, 1
    %s202 = smul.u32 %s201, 128
    %s203 = sshra.s32 %s100, 7
    %s204 = sand.u32 %s100, 127
    %s205 = sadd.s32 %s202, %s204
    %s206 = sld [smem:[#allocation3 + %s205]]
    %s207 = scalar_lea.vmem [#allocation4], %s206
    %v208 = vld [vmem:[%s207] sm:$0x1]
    %s209 = sshra.s32 %s104, 7
    %s210 = sand.u32 %s104, 127
    %s211 = sadd.s32 %s209, 1
    %s212 = smul.u32 %s211, 128
    %s213 = sshra.s32 %s104, 7
    %s214 = sand.u32 %s104, 127
    %s215 = sadd.s32 %s212, %s214
    %s216 = sld [smem:[#allocation3 + %s215]]
    %s217 = scalar_lea.vmem [#allocation4], %s216
    %v218 = vld [vmem:[%s217] sm:$0x1]
    %s219 = sshra.s32 %s108, 7
    %s220 = sand.u32 %s108, 127
    %s221 = sadd.s32 %s219, 1
    %s222 = smul.u32 %s221, 128
    %s223 = sshra.s32 %s108, 7
    %s224 = sand.u32 %s108, 127
    %s225 = sadd.s32 %s222, %s224
    %s226 = sld [smem:[#allocation3 + %s225]]
    %s227 = scalar_lea.vmem [#allocation4], %s226
    %v228 = vld [vmem:[%s227] sm:$0x1]
    %s229 = sshra.s32 %s112, 7
    %s230 = sand.u32 %s112, 127
    %s231 = sadd.s32 %s229, 1
    %s232 = smul.u32 %s231, 128
    %s233 = sshra.s32 %s112, 7
    %s234 = sand.u32 %s112, 127
    %s235 = sadd.s32 %s232, %s234
    %s236 = sld [smem:[#allocation3 + %s235]]
    %s237 = scalar_lea.vmem [#allocation4], %s236
    %v238 = vld [vmem:[%s237] sm:$0x1]
    %v240 = vrot.slane %v178, 7
    %v243 = vrot.slane %v188, 6
    %v246 = vrot.slane %v198, 5
    %v249 = vrot.slane %v208, 4
    %v252 = vrot.slane %v218, 3
    %v255 = vrot.slane %v228, 2
    %v258 = vrot.slane %v238, 1
    %v260 = vsel %vm137, %v168, %v240
    %v261 = vsel %vm139, %v260, %v243
    %v262 = vsel %vm141, %v261, %v246
    %v263 = vsel %vm143, %v262, %v249
    %v264 = vsel %vm145, %v263, %v252
    %v265 = vsel %vm147, %v264, %v255
    %v266 = vsel %vm149, %v265, %v258
    %v267 = vadd.f32 %v266, %v155
    %268 = vmatprep.subr.mxu0 0.0
    %269 = vmatpush1.msra.mxu0 %v83
    %270 = vmatprep.subr.mxu0 0.0
    %271 = vmatpush1.msra.mxu0 %v82
    %272 = vmatprep.subr.mxu0 0.0
    %273 = vmatpush1.msra.mxu0 %v81
    %274 = vmatprep.subr.mxu0 0.0
    %275 = vmatpush1.msra.mxu0 %v80
    %276 = vmatprep.subr.mxu0 0.0
    %277 = vmatpush1.msra.mxu0 %v79
    %278 = vmatprep.subr.mxu0 0.0
    %279 = vmatpush1.msra.mxu0 %v78
    %280 = vmatprep.subr.mxu0 0.0
    %281 = vmatpush1.msra.mxu0 %v77
    %282 = vmatprep.subr.mxu0 0.0
    %283 = vmatpush1.msra.mxu0 %v76
    %284 = vmatprep.subr.mxu0 0.0
    %285 = vmatpush1.msra.mxu0 %v75
    %286 = vmatprep.subr.mxu0 0.0
    %287 = vmatpush1.msra.mxu0 %v74
    %288 = vmatprep.subr.mxu0 0.0
    %289 = vmatpush1.msra.mxu0 %v73
    %290 = vmatprep.subr.mxu0 0.0
    %291 = vmatpush1.msra.mxu0 %v72
    %292 = vmatprep.subr.mxu0 0.0
    %293 = vmatpush1.msra.mxu0 %v71
    %294 = vmatprep.subr.mxu0 0.0
    %295 = vmatpush1.msra.mxu0 %v70
    %296 = vmatprep.subr.mxu0 0.0
    %297 = vmatpush1.msra.mxu0 %v69
    %298 = vmatprep.subr.mxu0 0.0
    %299 = vmatpush1.msra.mxu0 %v68
    %300 = vmatprep.subr.mxu0 0.0
    %301 = vmatpush2.msra.mxu0 0.0
    %302 = vmatprep.subr.mxu0 0.0
    %303 = vmatpush2.msra.mxu0 0.0
    %304 = vmatprep.subr.mxu0 0.0
    %305 = vmatpush2.msra.mxu0 0.0
    %306 = vmatprep.subr.mxu0 0.0
    %307 = vmatpush2.msra.mxu0 0.0
    %308 = vmatprep.subr.mxu0 0.0
    %309 = vmatpush2.msra.mxu0 0.0
    %310 = vmatprep.subr.mxu0 0.0
    %311 = vmatpush2.msra.mxu0 0.0
    %312 = vmatprep.subr.mxu0 0.0
    %313 = vmatpush2.msra.mxu0 0.0
    %314 = vmatprep.subr.mxu0 0.0
    %315 = vmatpush2.msra.mxu0 0.0
    %316 = vmatprep.subr.mxu0 0.0
    %317 = vmatpush2.msra.mxu0 0.0
    %318 = vmatprep.subr.mxu0 0.0
    %319 = vmatpush2.msra.mxu0 0.0
    %320 = vmatprep.subr.mxu0 0.0
    %321 = vmatpush2.msra.mxu0 0.0
    %322 = vmatprep.subr.mxu0 0.0
    %323 = vmatpush2.msra.mxu0 0.0
    %324 = vmatprep.subr.mxu0 0.0
    %325 = vmatpush2.msra.mxu0 0.0
    %326 = vmatprep.subr.mxu0 0.0
    %327 = vmatpush2.msra.mxu0 0.0
    %328 = vmatprep.subr.mxu0 0.0
    %329 = vmatpush2.msra.mxu0 0.0
    %330 = vmatprep.subr.mxu0 0.0
    %331 = vmatpush2.msra.mxu0 0.0
    %332 = vmatprep.mubr.f32.mxu0 0.0
    %333 = vmatmul.mubr.f32.gmra.mxu0 %v158
    %v334 = vpop.f32.mrf.mxu0
    %v335 = vadd.f32 0.0, %v334
    %v336 = vpop.f32.mrf.mxu0
    %337 = vdwg.mxu0
    %v338 = vadd.f32 %v267, %v335
    %v339 = vtanh.pop %v338
    %s340 = sadd.s32 %s159, 2
    %s341 = smul.u32 %s340, 128
    %s342 = sadd.s32 %s341, %s164
    %s343 = sld [smem:[#allocation3 + %s342]]
    %s344 = scalar_lea.vmem [#allocation4], %s343
    %v345 = vld [vmem:[%s344] sm:$0x1]
    %s346 = sadd.s32 %s169, 2
    %s347 = smul.u32 %s346, 128
    %s348 = sadd.s32 %s347, %s174
    %s349 = sld [smem:[#allocation3 + %s348]]
    %s350 = scalar_lea.vmem [#allocation4], %s349
    %v351 = vld [vmem:[%s350] sm:$0x1]
    %s352 = sadd.s32 %s179, 2
    %s353 = smul.u32 %s352, 128
    %s354 = sadd.s32 %s353, %s184
    %s355 = sld [smem:[#allocation3 + %s354]]
    %s356 = scalar_lea.vmem [#allocation4], %s355
    %v357 = vld [vmem:[%s356] sm:$0x1]
    %s358 = sadd.s32 %s189, 2
    %s359 = smul.u32 %s358, 128
    %s360 = sadd.s32 %s359, %s194
    %s361 = sld [smem:[#allocation3 + %s360]]
    %s362 = scalar_lea.vmem [#allocation4], %s361
    %v363 = vld [vmem:[%s362] sm:$0x1]
    %s364 = sadd.s32 %s199, 2
    %s365 = smul.u32 %s364, 128
    %s366 = sadd.s32 %s365, %s204
    %s367 = sld [smem:[#allocation3 + %s366]]
    %s368 = scalar_lea.vmem [#allocation4], %s367
    %v369 = vld [vmem:[%s368] sm:$0x1]
    %s370 = sadd.s32 %s209, 2
    %s371 = smul.u32 %s370, 128
    %s372 = sadd.s32 %s371, %s214
    %s373 = sld [smem:[#allocation3 + %s372]]
    %s374 = scalar_lea.vmem [#allocation4], %s373
    %v375 = vld [vmem:[%s374] sm:$0x1]
    %s376 = sadd.s32 %s219, 2
    %s377 = smul.u32 %s376, 128
    %s378 = sadd.s32 %s377, %s224
    %s379 = sld [smem:[#allocation3 + %s378]]
    %s380 = scalar_lea.vmem [#allocation4], %s379
    %v381 = vld [vmem:[%s380] sm:$0x1]
    %s382 = sadd.s32 %s229, 2
    %s383 = smul.u32 %s382, 128
    %s384 = sadd.s32 %s383, %s234
    %s385 = sld [smem:[#allocation3 + %s384]]
    %s386 = scalar_lea.vmem [#allocation4], %s385
    %v387 = vld [vmem:[%s386] sm:$0x1]
    %v389 = vrot.slane %v351, 7
    %v392 = vrot.slane %v357, 6
    %v395 = vrot.slane %v363, 5
    %v398 = vrot.slane %v369, 4
    %v401 = vrot.slane %v375, 3
    %v404 = vrot.slane %v381, 2
    %v407 = vrot.slane %v387, 1
    %v409 = vsel %vm137, %v345, %v389
    %v410 = vsel %vm139, %v409, %v392
    %v411 = vsel %vm141, %v410, %v395
    %v412 = vsel %vm143, %v411, %v398
    %v413 = vsel %vm145, %v412, %v401
    %v414 = vsel %vm147, %v413, %v404
    %v415 = vsel %vm149, %v414, %v407
    %v416 = vadd.f32 %v415, %v155
    %417 = vmatprep.subr.mxu0 0.0
    %418 = vmatpush1.msra.mxu0 %v83
    %419 = vmatprep.subr.mxu0 0.0
    %420 = vmatpush1.msra.mxu0 %v82
    %421 = vmatprep.subr.mxu0 0.0
    %422 = vmatpush1.msra.mxu0 %v81
    %423 = vmatprep.subr.mxu0 0.0
    %424 = vmatpush1.msra.mxu0 %v80
    %425 = vmatprep.subr.mxu0 0.0
    %426 = vmatpush1.msra.mxu0 %v79
    %427 = vmatprep.subr.mxu0 0.0
    %428 = vmatpush1.msra.mxu0 %v78
    %429 = vmatprep.subr.mxu0 0.0
    %430 = vmatpush1.msra.mxu0 %v77
    %431 = vmatprep.subr.mxu0 0.0
    %432 = vmatpush1.msra.mxu0 %v76
    %433 = vmatprep.subr.mxu0 0.0
    %434 = vmatpush1.msra.mxu0 %v75
    %435 = vmatprep.subr.mxu0 0.0
    %436 = vmatpush1.msra.mxu0 %v74
    %437 = vmatprep.subr.mxu0 0.0
    %438 = vmatpush1.msra.mxu0 %v73
    %439 = vmatprep.subr.mxu0 0.0
    %440 = vmatpush1.msra.mxu0 %v72
    %441 = vmatprep.subr.mxu0 0.0
    %442 = vmatpush1.msra.mxu0 %v71
    %443 = vmatprep.subr.mxu0 0.0
    %444 = vmatpush1.msra.mxu0 %v70
    %445 = vmatprep.subr.mxu0 0.0
    %446 = vmatpush1.msra.mxu0 %v69
    %447 = vmatprep.subr.mxu0 0.0
    %448 = vmatpush1.msra.mxu0 %v68
    %449 = vmatprep.subr.mxu0 0.0
    %450 = vmatpush2.msra.mxu0 0.0
    %451 = vmatprep.subr.mxu0 0.0
    %452 = vmatpush2.msra.mxu0 0.0
    %453 = vmatprep.subr.mxu0 0.0
    %454 = vmatpush2.msra.mxu0 0.0
    %455 = vmatprep.subr.mxu0 0.0
    %456 = vmatpush2.msra.mxu0 0.0
    %457 = vmatprep.subr.mxu0 0.0
    %458 = vmatpush2.msra.mxu0 0.0
    %459 = vmatprep.subr.mxu0 0.0
    %460 = vmatpush2.msra.mxu0 0.0
    %461 = vmatprep.subr.mxu0 0.0
    %462 = vmatpush2.msra.mxu0 0.0
    %463 = vmatprep.subr.mxu0 0.0
    %464 = vmatpush2.msra.mxu0 0.0
    %465 = vmatprep.subr.mxu0 0.0
    %466 = vmatpush2.msra.mxu0 0.0
    %467 = vmatprep.subr.mxu0 0.0
    %468 = vmatpush2.msra.mxu0 0.0
    %469 = vmatprep.subr.mxu0 0.0
    %470 = vmatpush2.msra.mxu0 0.0
    %471 = vmatprep.subr.mxu0 0.0
    %472 = vmatpush2.msra.mxu0 0.0
    %473 = vmatprep.subr.mxu0 0.0
    %474 = vmatpush2.msra.mxu0 0.0
    %475 = vmatprep.subr.mxu0 0.0
    %476 = vmatpush2.msra.mxu0 0.0
    %477 = vmatprep.subr.mxu0 0.0
    %478 = vmatpush2.msra.mxu0 0.0
    %479 = vmatprep.subr.mxu0 0.0
    %480 = vmatpush2.msra.mxu0 0.0
    %481 = vmatprep.mubr.f32.mxu0 0.0
    %482 = vmatmul.mubr.f32.gmra.mxu0 %v339
    %v483 = vpop.f32.mrf.mxu0
    %v484 = vadd.f32 0.0, %v483
    %v485 = vpop.f32.mrf.mxu0
    %486 = vdwg.mxu0
    %v487 = vadd.f32 %v416, %v484
    %v488 = vtanh.pop %v487
    %s489 = sadd.s32 %s159, 3
    %s490 = smul.u32 %s489, 128
    %s491 = sadd.s32 %s490, %s164
    %s492 = sld [smem:[#allocation3 + %s491]]
    %s493 = scalar_lea.vmem [#allocation4], %s492
    %v494 = vld [vmem:[%s493] sm:$0x1]
    %s495 = sadd.s32 %s169, 3
    %s496 = smul.u32 %s495, 128
    %s497 = sadd.s32 %s496, %s174
    %s498 = sld [smem:[#allocation3 + %s497]]
    %s499 = scalar_lea.vmem [#allocation4], %s498
    %v500 = vld [vmem:[%s499] sm:$0x1]
    %s501 = sadd.s32 %s179, 3
    %s502 = smul.u32 %s501, 128
    %s503 = sadd.s32 %s502, %s184
    %s504 = sld [smem:[#allocation3 + %s503]]
    %s505 = scalar_lea.vmem [#allocation4], %s504
    %v506 = vld [vmem:[%s505] sm:$0x1]
    %s507 = sadd.s32 %s189, 3
    %s508 = smul.u32 %s507, 128
    %s509 = sadd.s32 %s508, %s194
    %s510 = sld [smem:[#allocation3 + %s509]]
    %s511 = scalar_lea.vmem [#allocation4], %s510
    %v512 = vld [vmem:[%s511] sm:$0x1]
    %s513 = sadd.s32 %s199, 3
    %s514 = smul.u32 %s513, 128
    %s515 = sadd.s32 %s514, %s204
    %s516 = sld [smem:[#allocation3 + %s515]]
    %s517 = scalar_lea.vmem [#allocation4], %s516
    %v518 = vld [vmem:[%s517] sm:$0x1]
    %s519 = sadd.s32 %s209, 3
    %s520 = smul.u32 %s519, 128
    %s521 = sadd.s32 %s520, %s214
    %s522 = sld [smem:[#allocation3 + %s521]]
    %s523 = scalar_lea.vmem [#allocation4], %s522
    %v524 = vld [vmem:[%s523] sm:$0x1]
    %s525 = sadd.s32 %s219, 3
    %s526 = smul.u32 %s525, 128
    %s527 = sadd.s32 %s526, %s224
    %s528 = sld [smem:[#allocation3 + %s527]]
    %s529 = scalar_lea.vmem [#allocation4], %s528
    %v530 = vld [vmem:[%s529] sm:$0x1]
    %s531 = sadd.s32 %s229, 3
    %s532 = smul.u32 %s531, 128
    %s533 = sadd.s32 %s532, %s234
    %s534 = sld [smem:[#allocation3 + %s533]]
    %s535 = scalar_lea.vmem [#allocation4], %s534
    %v536 = vld [vmem:[%s535] sm:$0x1]
    %v538 = vrot.slane %v500, 7
    %v541 = vrot.slane %v506, 6
    %v544 = vrot.slane %v512, 5
    %v547 = vrot.slane %v518, 4
    %v550 = vrot.slane %v524, 3
    %v553 = vrot.slane %v530, 2
    %v556 = vrot.slane %v536, 1
    %v558 = vsel %vm137, %v494, %v538
    %v559 = vsel %vm139, %v558, %v541
    %v560 = vsel %vm141, %v559, %v544
    %v561 = vsel %vm143, %v560, %v547
    %v562 = vsel %vm145, %v561, %v550
    %v563 = vsel %vm147, %v562, %v553
    %v564 = vsel %vm149, %v563, %v556
    %v565 = vadd.f32 %v564, %v155
    %566 = vmatprep.subr.mxu0 0.0
    %567 = vmatpush1.msra.mxu0 %v83
    %568 = vmatprep.subr.mxu0 0.0
    %569 = vmatpush1.msra.mxu0 %v82
    %570 = vmatprep.subr.mxu0 0.0
    %571 = vmatpush1.msra.mxu0 %v81
    %572 = vmatprep.subr.mxu0 0.0
    %573 = vmatpush1.msra.mxu0 %v80
    %574 = vmatprep.subr.mxu0 0.0
    %575 = vmatpush1.msra.mxu0 %v79
    %576 = vmatprep.subr.mxu0 0.0
    %577 = vmatpush1.msra.mxu0 %v78
    %578 = vmatprep.subr.mxu0 0.0
    %579 = vmatpush1.msra.mxu0 %v77
    %580 = vmatprep.subr.mxu0 0.0
    %581 = vmatpush1.msra.mxu0 %v76
    %582 = vmatprep.subr.mxu0 0.0
    %583 = vmatpush1.msra.mxu0 %v75
    %584 = vmatprep.subr.mxu0 0.0
    %585 = vmatpush1.msra.mxu0 %v74
    %586 = vmatprep.subr.mxu0 0.0
    %587 = vmatpush1.msra.mxu0 %v73
    %588 = vmatprep.subr.mxu0 0.0
    %589 = vmatpush1.msra.mxu0 %v72
    %590 = vmatprep.subr.mxu0 0.0
    %591 = vmatpush1.msra.mxu0 %v71
    %592 = vmatprep.subr.mxu0 0.0
    %593 = vmatpush1.msra.mxu0 %v70
    %594 = vmatprep.subr.mxu0 0.0
    %595 = vmatpush1.msra.mxu0 %v69
    %596 = vmatprep.subr.mxu0 0.0
    %597 = vmatpush1.msra.mxu0 %v68
    %598 = vmatprep.subr.mxu0 0.0
    %599 = vmatpush2.msra.mxu0 0.0
    %600 = vmatprep.subr.mxu0 0.0
    %601 = vmatpush2.msra.mxu0 0.0
    %602 = vmatprep.subr.mxu0 0.0
    %603 = vmatpush2.msra.mxu0 0.0
    %604 = vmatprep.subr.mxu0 0.0
    %605 = vmatpush2.msra.mxu0 0.0
    %606 = vmatprep.subr.mxu0 0.0
    %607 = vmatpush2.msra.mxu0 0.0
    %608 = vmatprep.subr.mxu0 0.0
    %609 = vmatpush2.msra.mxu0 0.0
    %610 = vmatprep.subr.mxu0 0.0
    %611 = vmatpush2.msra.mxu0 0.0
    %612 = vmatprep.subr.mxu0 0.0
    %613 = vmatpush2.msra.mxu0 0.0
    %614 = vmatprep.subr.mxu0 0.0
    %615 = vmatpush2.msra.mxu0 0.0
    %616 = vmatprep.subr.mxu0 0.0
    %617 = vmatpush2.msra.mxu0 0.0
    %618 = vmatprep.subr.mxu0 0.0
    %619 = vmatpush2.msra.mxu0 0.0
    %620 = vmatprep.subr.mxu0 0.0
    %621 = vmatpush2.msra.mxu0 0.0
    %622 = vmatprep.subr.mxu0 0.0
    %623 = vmatpush2.msra.mxu0 0.0
    %624 = vmatprep.subr.mxu0 0.0
    %625 = vmatpush2.msra.mxu0 0.0
    %626 = vmatprep.subr.mxu0 0.0
    %627 = vmatpush2.msra.mxu0 0.0
    %628 = vmatprep.subr.mxu0 0.0
    %629 = vmatpush2.msra.mxu0 0.0
    %630 = vmatprep.mubr.f32.mxu0 0.0
    %631 = vmatmul.mubr.f32.gmra.mxu0 %v488
    %v632 = vpop.f32.mrf.mxu0
    %v633 = vadd.f32 0.0, %v632
    %v634 = vpop.f32.mrf.mxu0
    %635 = vdwg.mxu0
    %v636 = vadd.f32 %v565, %v633
    %v637 = vtanh.pop %v636
    %s638 = sadd.s32 %s159, 4
    %s639 = smul.u32 %s638, 128
    %s640 = sadd.s32 %s639, %s164
    %s641 = sld [smem:[#allocation3 + %s640]]
    %s642 = scalar_lea.vmem [#allocation4], %s641
    %v643 = vld [vmem:[%s642] sm:$0x1]
    %s644 = sadd.s32 %s169, 4
    %s645 = smul.u32 %s644, 128
    %s646 = sadd.s32 %s645, %s174
    %s647 = sld [smem:[#allocation3 + %s646]]
    %s648 = scalar_lea.vmem [#allocation4], %s647
    %v649 = vld [vmem:[%s648] sm:$0x1]
    %s650 = sadd.s32 %s179, 4
    %s651 = smul.u32 %s650, 128
    %s652 = sadd.s32 %s651, %s184
    %s653 = sld [smem:[#allocation3 + %s652]]
    %s654 = scalar_lea.vmem [#allocation4], %s653
    %v655 = vld [vmem:[%s654] sm:$0x1]
    %s656 = sadd.s32 %s189, 4
    %s657 = smul.u32 %s656, 128
    %s658 = sadd.s32 %s657, %s194
    %s659 = sld [smem:[#allocation3 + %s658]]
    %s660 = scalar_lea.vmem [#allocation4], %s659
    %v661 = vld [vmem:[%s660] sm:$0x1]
    %s662 = sadd.s32 %s199, 4
    %s663 = smul.u32 %s662, 128
    %s664 = sadd.s32 %s663, %s204
    %s665 = sld [smem:[#allocation3 + %s664]]
    %s666 = scalar_lea.vmem [#allocation4], %s665
    %v667 = vld [vmem:[%s666] sm:$0x1]
    %s668 = sadd.s32 %s209, 4
    %s669 = smul.u32 %s668, 128
    %s670 = sadd.s32 %s669, %s214
    %s671 = sld [smem:[#allocation3 + %s670]]
    %s672 = scalar_lea.vmem [#allocation4], %s671
    %v673 = vld [vmem:[%s672] sm:$0x1]
    %s674 = sadd.s32 %s219, 4
    %s675 = smul.u32 %s674, 128
    %s676 = sadd.s32 %s675, %s224
    %s677 = sld [smem:[#allocation3 + %s676]]
    %s678 = scalar_lea.vmem [#allocation4], %s677
    %v679 = vld [vmem:[%s678] sm:$0x1]
    %s680 = sadd.s32 %s229, 4
    %s681 = smul.u32 %s680, 128
    %s682 = sadd.s32 %s681, %s234
    %s683 = sld [smem:[#allocation3 + %s682]]
    %s684 = scalar_lea.vmem [#allocation4], %s683
    %v685 = vld [vmem:[%s684] sm:$0x1]
    %v687 = vrot.slane %v649, 7
    %v690 = vrot.slane %v655, 6
    %v693 = vrot.slane %v661, 5
    %v696 = vrot.slane %v667, 4
    %v699 = vrot.slane %v673, 3
    %v702 = vrot.slane %v679, 2
    %v705 = vrot.slane %v685, 1
    %v707 = vsel %vm137, %v643, %v687
    %v708 = vsel %vm139, %v707, %v690
    %v709 = vsel %vm141, %v708, %v693
    %v710 = vsel %vm143, %v709, %v696
    %v711 = vsel %vm145, %v710, %v699
    %v712 = vsel %vm147, %v711, %v702
    %v713 = vsel %vm149, %v712, %v705
    %v714 = vadd.f32 %v713, %v155
    %715 = vmatprep.subr.mxu0 0.0
    %716 = vmatpush1.msra.mxu0 %v83
    %717 = vmatprep.subr.mxu0 0.0
    %718 = vmatpush1.msra.mxu0 %v82
    %719 = vmatprep.subr.mxu0 0.0
    %720 = vmatpush1.msra.mxu0 %v81
    %721 = vmatprep.subr.mxu0 0.0
    %722 = vmatpush1.msra.mxu0 %v80
    %723 = vmatprep.subr.mxu0 0.0
    %724 = vmatpush1.msra.mxu0 %v79
    %725 = vmatprep.subr.mxu0 0.0
    %726 = vmatpush1.msra.mxu0 %v78
    %727 = vmatprep.subr.mxu0 0.0
    %728 = vmatpush1.msra.mxu0 %v77
    %729 = vmatprep.subr.mxu0 0.0
    %730 = vmatpush1.msra.mxu0 %v76
    %731 = vmatprep.subr.mxu0 0.0
    %732 = vmatpush1.msra.mxu0 %v75
    %733 = vmatprep.subr.mxu0 0.0
    %734 = vmatpush1.msra.mxu0 %v74
    %735 = vmatprep.subr.mxu0 0.0
    %736 = vmatpush1.msra.mxu0 %v73
    %737 = vmatprep.subr.mxu0 0.0
    %738 = vmatpush1.msra.mxu0 %v72
    %739 = vmatprep.subr.mxu0 0.0
    %740 = vmatpush1.msra.mxu0 %v71
    %741 = vmatprep.subr.mxu0 0.0
    %742 = vmatpush1.msra.mxu0 %v70
    %743 = vmatprep.subr.mxu0 0.0
    %744 = vmatpush1.msra.mxu0 %v69
    %745 = vmatprep.subr.mxu0 0.0
    %746 = vmatpush1.msra.mxu0 %v68
    %747 = vmatprep.subr.mxu0 0.0
    %748 = vmatpush2.msra.mxu0 0.0
    %749 = vmatprep.subr.mxu0 0.0
    %750 = vmatpush2.msra.mxu0 0.0
    %751 = vmatprep.subr.mxu0 0.0
    %752 = vmatpush2.msra.mxu0 0.0
    %753 = vmatprep.subr.mxu0 0.0
    %754 = vmatpush2.msra.mxu0 0.0
    %755 = vmatprep.subr.mxu0 0.0
    %756 = vmatpush2.msra.mxu0 0.0
    %757 = vmatprep.subr.mxu0 0.0
    %758 = vmatpush2.msra.mxu0 0.0
    %759 = vmatprep.subr.mxu0 0.0
    %760 = vmatpush2.msra.mxu0 0.0
    %761 = vmatprep.subr.mxu0 0.0
    %762 = vmatpush2.msra.mxu0 0.0
    %763 = vmatprep.subr.mxu0 0.0
    %764 = vmatpush2.msra.mxu0 0.0
    %765 = vmatprep.subr.mxu0 0.0
    %766 = vmatpush2.msra.mxu0 0.0
    %767 = vmatprep.subr.mxu0 0.0
    %768 = vmatpush2.msra.mxu0 0.0
    %769 = vmatprep.subr.mxu0 0.0
    %770 = vmatpush2.msra.mxu0 0.0
    %771 = vmatprep.subr.mxu0 0.0
    %772 = vmatpush2.msra.mxu0 0.0
    %773 = vmatprep.subr.mxu0 0.0
    %774 = vmatpush2.msra.mxu0 0.0
    %775 = vmatprep.subr.mxu0 0.0
    %776 = vmatpush2.msra.mxu0 0.0
    %777 = vmatprep.subr.mxu0 0.0
    %778 = vmatpush2.msra.mxu0 0.0
    %779 = vmatprep.mubr.f32.mxu0 0.0
    %780 = vmatmul.mubr.f32.gmra.mxu0 %v637
    %v781 = vpop.f32.mrf.mxu0
    %v782 = vadd.f32 0.0, %v781
    %v783 = vpop.f32.mrf.mxu0
    %784 = vdwg.mxu0
    %v785 = vadd.f32 %v714, %v782
    %v786 = vtanh.pop %v785
    %s787 = sadd.s32 %s159, 5
    %s788 = smul.u32 %s787, 128
    %s789 = sadd.s32 %s788, %s164
    %s790 = sld [smem:[#allocation3 + %s789]]
    %s791 = scalar_lea.vmem [#allocation4], %s790
    %v792 = vld [vmem:[%s791] sm:$0x1]
    %s793 = sadd.s32 %s169, 5
    %s794 = smul.u32 %s793, 128
    %s795 = sadd.s32 %s794, %s174
    %s796 = sld [smem:[#allocation3 + %s795]]
    %s797 = scalar_lea.vmem [#allocation4], %s796
    %v798 = vld [vmem:[%s797] sm:$0x1]
    %s799 = sadd.s32 %s179, 5
    %s800 = smul.u32 %s799, 128
    %s801 = sadd.s32 %s800, %s184
    %s802 = sld [smem:[#allocation3 + %s801]]
    %s803 = scalar_lea.vmem [#allocation4], %s802
    %v804 = vld [vmem:[%s803] sm:$0x1]
    %s805 = sadd.s32 %s189, 5
    %s806 = smul.u32 %s805, 128
    %s807 = sadd.s32 %s806, %s194
    %s808 = sld [smem:[#allocation3 + %s807]]
    %s809 = scalar_lea.vmem [#allocation4], %s808
    %v810 = vld [vmem:[%s809] sm:$0x1]
    %s811 = sadd.s32 %s199, 5
    %s812 = smul.u32 %s811, 128
    %s813 = sadd.s32 %s812, %s204
    %s814 = sld [smem:[#allocation3 + %s813]]
    %s815 = scalar_lea.vmem [#allocation4], %s814
    %v816 = vld [vmem:[%s815] sm:$0x1]
    %s817 = sadd.s32 %s209, 5
    %s818 = smul.u32 %s817, 128
    %s819 = sadd.s32 %s818, %s214
    %s820 = sld [smem:[#allocation3 + %s819]]
    %s821 = scalar_lea.vmem [#allocation4], %s820
    %v822 = vld [vmem:[%s821] sm:$0x1]
    %s823 = sadd.s32 %s219, 5
    %s824 = smul.u32 %s823, 128
    %s825 = sadd.s32 %s824, %s224
    %s826 = sld [smem:[#allocation3 + %s825]]
    %s827 = scalar_lea.vmem [#allocation4], %s826
    %v828 = vld [vmem:[%s827] sm:$0x1]
    %s829 = sadd.s32 %s229, 5
    %s830 = smul.u32 %s829, 128
    %s831 = sadd.s32 %s830, %s234
    %s832 = sld [smem:[#allocation3 + %s831]]
    %s833 = scalar_lea.vmem [#allocation4], %s832
    %v834 = vld [vmem:[%s833] sm:$0x1]
    %v836 = vrot.slane %v798, 7
    %v839 = vrot.slane %v804, 6
    %v842 = vrot.slane %v810, 5
    %v845 = vrot.slane %v816, 4
    %v848 = vrot.slane %v822, 3
    %v851 = vrot.slane %v828, 2
    %v854 = vrot.slane %v834, 1
    %v856 = vsel %vm137, %v792, %v836
    %v857 = vsel %vm139, %v856, %v839
    %v858 = vsel %vm141, %v857, %v842
    %v859 = vsel %vm143, %v858, %v845
    %v860 = vsel %vm145, %v859, %v848
    %v861 = vsel %vm147, %v860, %v851
    %v862 = vsel %vm149, %v861, %v854
    %v863 = vadd.f32 %v862, %v155
    %864 = vmatprep.subr.mxu0 0.0
    %865 = vmatpush1.msra.mxu0 %v83
    %866 = vmatprep.subr.mxu0 0.0
    %867 = vmatpush1.msra.mxu0 %v82
    %868 = vmatprep.subr.mxu0 0.0
    %869 = vmatpush1.msra.mxu0 %v81
    %870 = vmatprep.subr.mxu0 0.0
    %871 = vmatpush1.msra.mxu0 %v80
    %872 = vmatprep.subr.mxu0 0.0
    %873 = vmatpush1.msra.mxu0 %v79
    %874 = vmatprep.subr.mxu0 0.0
    %875 = vmatpush1.msra.mxu0 %v78
    %876 = vmatprep.subr.mxu0 0.0
    %877 = vmatpush1.msra.mxu0 %v77
    %878 = vmatprep.subr.mxu0 0.0
    %879 = vmatpush1.msra.mxu0 %v76
    %880 = vmatprep.subr.mxu0 0.0
    %881 = vmatpush1.msra.mxu0 %v75
    %882 = vmatprep.subr.mxu0 0.0
    %883 = vmatpush1.msra.mxu0 %v74
    %884 = vmatprep.subr.mxu0 0.0
    %885 = vmatpush1.msra.mxu0 %v73
    %886 = vmatprep.subr.mxu0 0.0
    %887 = vmatpush1.msra.mxu0 %v72
    %888 = vmatprep.subr.mxu0 0.0
    %889 = vmatpush1.msra.mxu0 %v71
    %890 = vmatprep.subr.mxu0 0.0
    %891 = vmatpush1.msra.mxu0 %v70
    %892 = vmatprep.subr.mxu0 0.0
    %893 = vmatpush1.msra.mxu0 %v69
    %894 = vmatprep.subr.mxu0 0.0
    %895 = vmatpush1.msra.mxu0 %v68
    %896 = vmatprep.subr.mxu0 0.0
    %897 = vmatpush2.msra.mxu0 0.0
    %898 = vmatprep.subr.mxu0 0.0
    %899 = vmatpush2.msra.mxu0 0.0
    %900 = vmatprep.subr.mxu0 0.0
    %901 = vmatpush2.msra.mxu0 0.0
    %902 = vmatprep.subr.mxu0 0.0
    %903 = vmatpush2.msra.mxu0 0.0
    %904 = vmatprep.subr.mxu0 0.0
    %905 = vmatpush2.msra.mxu0 0.0
    %906 = vmatprep.subr.mxu0 0.0
    %907 = vmatpush2.msra.mxu0 0.0
    %908 = vmatprep.subr.mxu0 0.0
    %909 = vmatpush2.msra.mxu0 0.0
    %910 = vmatprep.subr.mxu0 0.0
    %911 = vmatpush2.msra.mxu0 0.0
    %912 = vmatprep.subr.mxu0 0.0
    %913 = vmatpush2.msra.mxu0 0.0
    %914 = vmatprep.subr.mxu0 0.0
    %915 = vmatpush2.msra.mxu0 0.0
    %916 = vmatprep.subr.mxu0 0.0
    %917 = vmatpush2.msra.mxu0 0.0
    %918 = vmatprep.subr.mxu0 0.0
    %919 = vmatpush2.msra.mxu0 0.0
    %920 = vmatprep.subr.mxu0 0.0
    %921 = vmatpush2.msra.mxu0 0.0
    %922 = vmatprep.subr.mxu0 0.0
    %923 = vmatpush2.msra.mxu0 0.0
    %924 = vmatprep.subr.mxu0 0.0
    %925 = vmatpush2.msra.mxu0 0.0
    %926 = vmatprep.subr.mxu0 0.0
    %927 = vmatpush2.msra.mxu0 0.0
    %928 = vmatprep.mubr.f32.mxu0 0.0
    %929 = vmatmul.mubr.f32.gmra.mxu0 %v786
    %v930 = vpop.f32.mrf.mxu0
    %v931 = vadd.f32 0.0, %v930
    %v932 = vpop.f32.mrf.mxu0
    %933 = vdwg.mxu0
    %v934 = vadd.f32 %v863, %v931
    %v935 = vtanh.pop %v934
    %s936 = sadd.s32 %s159, 6
    %s937 = smul.u32 %s936, 128
    %s938 = sadd.s32 %s937, %s164
    %s939 = sld [smem:[#allocation3 + %s938]]
    %s940 = scalar_lea.vmem [#allocation4], %s939
    %v941 = vld [vmem:[%s940] sm:$0x1]
    %s942 = sadd.s32 %s169, 6
    %s943 = smul.u32 %s942, 128
    %s944 = sadd.s32 %s943, %s174
    %s945 = sld [smem:[#allocation3 + %s944]]
    %s946 = scalar_lea.vmem [#allocation4], %s945
    %v947 = vld [vmem:[%s946] sm:$0x1]
    %s948 = sadd.s32 %s179, 6
    %s949 = smul.u32 %s948, 128
    %s950 = sadd.s32 %s949, %s184
    %s951 = sld [smem:[#allocation3 + %s950]]
    %s952 = scalar_lea.vmem [#allocation4], %s951
    %v953 = vld [vmem:[%s952] sm:$0x1]
    %s954 = sadd.s32 %s189, 6
    %s955 = smul.u32 %s954, 128
    %s956 = sadd.s32 %s955, %s194
    %s957 = sld [smem:[#allocation3 + %s956]]
    %s958 = scalar_lea.vmem [#allocation4], %s957
    %v959 = vld [vmem:[%s958] sm:$0x1]
    %s960 = sadd.s32 %s199, 6
    %s961 = smul.u32 %s960, 128
    %s962 = sadd.s32 %s961, %s204
    %s963 = sld [smem:[#allocation3 + %s962]]
    %s964 = scalar_lea.vmem [#allocation4], %s963
    %v965 = vld [vmem:[%s964] sm:$0x1]
    %s966 = sadd.s32 %s209, 6
    %s967 = smul.u32 %s966, 128
    %s968 = sadd.s32 %s967, %s214
    %s969 = sld [smem:[#allocation3 + %s968]]
    %s970 = scalar_lea.vmem [#allocation4], %s969
    %v971 = vld [vmem:[%s970] sm:$0x1]
    %s972 = sadd.s32 %s219, 6
    %s973 = smul.u32 %s972, 128
    %s974 = sadd.s32 %s973, %s224
    %s975 = sld [smem:[#allocation3 + %s974]]
    %s976 = scalar_lea.vmem [#allocation4], %s975
    %v977 = vld [vmem:[%s976] sm:$0x1]
    %s978 = sadd.s32 %s229, 6
    %s979 = smul.u32 %s978, 128
    %s980 = sadd.s32 %s979, %s234
    %s981 = sld [smem:[#allocation3 + %s980]]
    %s982 = scalar_lea.vmem [#allocation4], %s981
    %v983 = vld [vmem:[%s982] sm:$0x1]
    %v985 = vrot.slane %v947, 7
    %v988 = vrot.slane %v953, 6
    %v991 = vrot.slane %v959, 5
    %v994 = vrot.slane %v965, 4
    %v997 = vrot.slane %v971, 3
    %v1000 = vrot.slane %v977, 2
    %v1003 = vrot.slane %v983, 1
    %v1005 = vsel %vm137, %v941, %v985
    %v1006 = vsel %vm139, %v1005, %v988
    %v1007 = vsel %vm141, %v1006, %v991
    %v1008 = vsel %vm143, %v1007, %v994
    %v1009 = vsel %vm145, %v1008, %v997
    %v1010 = vsel %vm147, %v1009, %v1000
    %v1011 = vsel %vm149, %v1010, %v1003
    %v1012 = vadd.f32 %v1011, %v155
    %1013 = vmatprep.subr.mxu0 0.0
    %1014 = vmatpush1.msra.mxu0 %v83
    %1015 = vmatprep.subr.mxu0 0.0
    %1016 = vmatpush1.msra.mxu0 %v82
    %1017 = vmatprep.subr.mxu0 0.0
    %1018 = vmatpush1.msra.mxu0 %v81
    %1019 = vmatprep.subr.mxu0 0.0
    %1020 = vmatpush1.msra.mxu0 %v80
    %1021 = vmatprep.subr.mxu0 0.0
    %1022 = vmatpush1.msra.mxu0 %v79
    %1023 = vmatprep.subr.mxu0 0.0
    %1024 = vmatpush1.msra.mxu0 %v78
    %1025 = vmatprep.subr.mxu0 0.0
    %1026 = vmatpush1.msra.mxu0 %v77
    %1027 = vmatprep.subr.mxu0 0.0
    %1028 = vmatpush1.msra.mxu0 %v76
    %1029 = vmatprep.subr.mxu0 0.0
    %1030 = vmatpush1.msra.mxu0 %v75
    %1031 = vmatprep.subr.mxu0 0.0
    %1032 = vmatpush1.msra.mxu0 %v74
    %1033 = vmatprep.subr.mxu0 0.0
    %1034 = vmatpush1.msra.mxu0 %v73
    %1035 = vmatprep.subr.mxu0 0.0
    %1036 = vmatpush1.msra.mxu0 %v72
    %1037 = vmatprep.subr.mxu0 0.0
    %1038 = vmatpush1.msra.mxu0 %v71
    %1039 = vmatprep.subr.mxu0 0.0
    %1040 = vmatpush1.msra.mxu0 %v70
    %1041 = vmatprep.subr.mxu0 0.0
    %1042 = vmatpush1.msra.mxu0 %v69
    %1043 = vmatprep.subr.mxu0 0.0
    %1044 = vmatpush1.msra.mxu0 %v68
    %1045 = vmatprep.subr.mxu0 0.0
    %1046 = vmatpush2.msra.mxu0 0.0
    %1047 = vmatprep.subr.mxu0 0.0
    %1048 = vmatpush2.msra.mxu0 0.0
    %1049 = vmatprep.subr.mxu0 0.0
    %1050 = vmatpush2.msra.mxu0 0.0
    %1051 = vmatprep.subr.mxu0 0.0
    %1052 = vmatpush2.msra.mxu0 0.0
    %1053 = vmatprep.subr.mxu0 0.0
    %1054 = vmatpush2.msra.mxu0 0.0
    %1055 = vmatprep.subr.mxu0 0.0
    %1056 = vmatpush2.msra.mxu0 0.0
    %1057 = vmatprep.subr.mxu0 0.0
    %1058 = vmatpush2.msra.mxu0 0.0
    %1059 = vmatprep.subr.mxu0 0.0
    %1060 = vmatpush2.msra.mxu0 0.0
    %1061 = vmatprep.subr.mxu0 0.0
    %1062 = vmatpush2.msra.mxu0 0.0
    %1063 = vmatprep.subr.mxu0 0.0
    %1064 = vmatpush2.msra.mxu0 0.0
    %1065 = vmatprep.subr.mxu0 0.0
    %1066 = vmatpush2.msra.mxu0 0.0
    %1067 = vmatprep.subr.mxu0 0.0
    %1068 = vmatpush2.msra.mxu0 0.0
    %1069 = vmatprep.subr.mxu0 0.0
    %1070 = vmatpush2.msra.mxu0 0.0
    %1071 = vmatprep.subr.mxu0 0.0
    %1072 = vmatpush2.msra.mxu0 0.0
    %1073 = vmatprep.subr.mxu0 0.0
    %1074 = vmatpush2.msra.mxu0 0.0
    %1075 = vmatprep.subr.mxu0 0.0
    %1076 = vmatpush2.msra.mxu0 0.0
    %1077 = vmatprep.mubr.f32.mxu0 0.0
    %1078 = vmatmul.mubr.f32.gmra.mxu0 %v935
    %v1079 = vpop.f32.mrf.mxu0
    %v1080 = vadd.f32 0.0, %v1079
    %v1081 = vpop.f32.mrf.mxu0
    %1082 = vdwg.mxu0
    %v1083 = vadd.f32 %v1012, %v1080
    %v1084 = vtanh.pop %v1083
    %s1085 = sadd.s32 %s159, 7
    %s1086 = smul.u32 %s1085, 128
    %s1087 = sadd.s32 %s1086, %s164
    %s1088 = sld [smem:[#allocation3 + %s1087]]
    %s1089 = scalar_lea.vmem [#allocation4], %s1088
    %v1090 = vld [vmem:[%s1089] sm:$0x1]
    %s1091 = sadd.s32 %s169, 7
    %s1092 = smul.u32 %s1091, 128
    %s1093 = sadd.s32 %s1092, %s174
    %s1094 = sld [smem:[#allocation3 + %s1093]]
    %s1095 = scalar_lea.vmem [#allocation4], %s1094
    %v1096 = vld [vmem:[%s1095] sm:$0x1]
    %s1097 = sadd.s32 %s179, 7
    %s1098 = smul.u32 %s1097, 128
    %s1099 = sadd.s32 %s1098, %s184
    %s1100 = sld [smem:[#allocation3 + %s1099]]
    %s1101 = scalar_lea.vmem [#allocation4], %s1100
    %v1102 = vld [vmem:[%s1101] sm:$0x1]
    %s1103 = sadd.s32 %s189, 7
    %s1104 = smul.u32 %s1103, 128
    %s1105 = sadd.s32 %s1104, %s194
    %s1106 = sld [smem:[#allocation3 + %s1105]]
    %s1107 = scalar_lea.vmem [#allocation4], %s1106
    %v1108 = vld [vmem:[%s1107] sm:$0x1]
    %s1109 = sadd.s32 %s199, 7
    %s1110 = smul.u32 %s1109, 128
    %s1111 = sadd.s32 %s1110, %s204
    %s1112 = sld [smem:[#allocation3 + %s1111]]
    %s1113 = scalar_lea.vmem [#allocation4], %s1112
    %v1114 = vld [vmem:[%s1113] sm:$0x1]
    %s1115 = sadd.s32 %s209, 7
    %s1116 = smul.u32 %s1115, 128
    %s1117 = sadd.s32 %s1116, %s214
    %s1118 = sld [smem:[#allocation3 + %s1117]]
    %s1119 = scalar_lea.vmem [#allocation4], %s1118
    %v1120 = vld [vmem:[%s1119] sm:$0x1]
    %s1121 = sadd.s32 %s219, 7
    %s1122 = smul.u32 %s1121, 128
    %s1123 = sadd.s32 %s1122, %s224
    %s1124 = sld [smem:[#allocation3 + %s1123]]
    %s1125 = scalar_lea.vmem [#allocation4], %s1124
    %v1126 = vld [vmem:[%s1125] sm:$0x1]
    %s1127 = sadd.s32 %s229, 7
    %s1128 = smul.u32 %s1127, 128
    %s1129 = sadd.s32 %s1128, %s234
    %s1130 = sld [smem:[#allocation3 + %s1129]]
    %s1131 = scalar_lea.vmem [#allocation4], %s1130
    %v1132 = vld [vmem:[%s1131] sm:$0x1]
    %v1134 = vrot.slane %v1096, 7
    %v1137 = vrot.slane %v1102, 6
    %v1140 = vrot.slane %v1108, 5
    %v1143 = vrot.slane %v1114, 4
    %v1146 = vrot.slane %v1120, 3
    %v1149 = vrot.slane %v1126, 2
    %v1152 = vrot.slane %v1132, 1
    %v1154 = vsel %vm137, %v1090, %v1134
    %v1155 = vsel %vm139, %v1154, %v1137
    %v1156 = vsel %vm141, %v1155, %v1140
    %v1157 = vsel %vm143, %v1156, %v1143
    %v1158 = vsel %vm145, %v1157, %v1146
    %v1159 = vsel %vm147, %v1158, %v1149
    %v1160 = vsel %vm149, %v1159, %v1152
    %v1161 = vadd.f32 %v1160, %v155
    %1162 = vmatprep.subr.mxu0 0.0
    %1163 = vmatpush1.msra.mxu0 %v83
    %1164 = vmatprep.subr.mxu0 0.0
    %1165 = vmatpush1.msra.mxu0 %v82
    %1166 = vmatprep.subr.mxu0 0.0
    %1167 = vmatpush1.msra.mxu0 %v81
    %1168 = vmatprep.subr.mxu0 0.0
    %1169 = vmatpush1.msra.mxu0 %v80
    %1170 = vmatprep.subr.mxu0 0.0
    %1171 = vmatpush1.msra.mxu0 %v79
    %1172 = vmatprep.subr.mxu0 0.0
    %1173 = vmatpush1.msra.mxu0 %v78
    %1174 = vmatprep.subr.mxu0 0.0
    %1175 = vmatpush1.msra.mxu0 %v77
    %1176 = vmatprep.subr.mxu0 0.0
    %1177 = vmatpush1.msra.mxu0 %v76
    %1178 = vmatprep.subr.mxu0 0.0
    %1179 = vmatpush1.msra.mxu0 %v75
    %1180 = vmatprep.subr.mxu0 0.0
    %1181 = vmatpush1.msra.mxu0 %v74
    %1182 = vmatprep.subr.mxu0 0.0
    %1183 = vmatpush1.msra.mxu0 %v73
    %1184 = vmatprep.subr.mxu0 0.0
    %1185 = vmatpush1.msra.mxu0 %v72
    %1186 = vmatprep.subr.mxu0 0.0
    %1187 = vmatpush1.msra.mxu0 %v71
    %1188 = vmatprep.subr.mxu0 0.0
    %1189 = vmatpush1.msra.mxu0 %v70
    %1190 = vmatprep.subr.mxu0 0.0
    %1191 = vmatpush1.msra.mxu0 %v69
    %1192 = vmatprep.subr.mxu0 0.0
    %1193 = vmatpush1.msra.mxu0 %v68
    %1194 = vmatprep.subr.mxu0 0.0
    %1195 = vmatpush2.msra.mxu0 0.0
    %1196 = vmatprep.subr.mxu0 0.0
    %1197 = vmatpush2.msra.mxu0 0.0
    %1198 = vmatprep.subr.mxu0 0.0
    %1199 = vmatpush2.msra.mxu0 0.0
    %1200 = vmatprep.subr.mxu0 0.0
    %1201 = vmatpush2.msra.mxu0 0.0
    %1202 = vmatprep.subr.mxu0 0.0
    %1203 = vmatpush2.msra.mxu0 0.0
    %1204 = vmatprep.subr.mxu0 0.0
    %1205 = vmatpush2.msra.mxu0 0.0
    %1206 = vmatprep.subr.mxu0 0.0
    %1207 = vmatpush2.msra.mxu0 0.0
    %1208 = vmatprep.subr.mxu0 0.0
    %1209 = vmatpush2.msra.mxu0 0.0
    %1210 = vmatprep.subr.mxu0 0.0
    %1211 = vmatpush2.msra.mxu0 0.0
    %1212 = vmatprep.subr.mxu0 0.0
    %1213 = vmatpush2.msra.mxu0 0.0
    %1214 = vmatprep.subr.mxu0 0.0
    %1215 = vmatpush2.msra.mxu0 0.0
    %1216 = vmatprep.subr.mxu0 0.0
    %1217 = vmatpush2.msra.mxu0 0.0
    %1218 = vmatprep.subr.mxu0 0.0
    %1219 = vmatpush2.msra.mxu0 0.0
    %1220 = vmatprep.subr.mxu0 0.0
    %1221 = vmatpush2.msra.mxu0 0.0
    %1222 = vmatprep.subr.mxu0 0.0
    %1223 = vmatpush2.msra.mxu0 0.0
    %1224 = vmatprep.subr.mxu0 0.0
    %1225 = vmatpush2.msra.mxu0 0.0
    %1226 = vmatprep.mubr.f32.mxu0 0.0
    %1227 = vmatmul.mubr.f32.gmra.mxu0 %v1084
    %v1228 = vpop.f32.mrf.mxu0
    %v1229 = vadd.f32 0.0, %v1228
    %v1230 = vpop.f32.mrf.mxu0
    %1231 = vdwg.mxu0
    %v1232 = vadd.f32 %v1161, %v1229
    %v1233 = vtanh.pop %v1232
    %v1234 = vld [vmem:[#allocation9] sm:$0xff]
    %v1235 = vld [vmem:[#allocation9 + $0x8] sm:$0xff]
    %v1236 = vld [vmem:[#allocation9 + $0x10] sm:$0xff]
    %v1237 = vld [vmem:[#allocation9 + $0x18] sm:$0xff]
    %v1238 = vld [vmem:[#allocation9 + $0x20] sm:$0xff]
    %v1239 = vld [vmem:[#allocation9 + $0x28] sm:$0xff]
    %v1240 = vld [vmem:[#allocation9 + $0x30] sm:$0xff]
    %v1241 = vld [vmem:[#allocation9 + $0x38] sm:$0xff]
    %v1242 = vld [vmem:[#allocation9 + $0x40] sm:$0xff]
    %v1243 = vld [vmem:[#allocation9 + $0x48] sm:$0xff]
    %v1244 = vld [vmem:[#allocation9 + $0x50] sm:$0xff]
    %v1245 = vld [vmem:[#allocation9 + $0x58] sm:$0xff]
    %v1246 = vld [vmem:[#allocation9 + $0x60] sm:$0xff]
    %v1247 = vld [vmem:[#allocation9 + $0x68] sm:$0xff]
    %v1248 = vld [vmem:[#allocation9 + $0x70] sm:$0xff]
    %v1249 = vld [vmem:[#allocation9 + $0x78] sm:$0xff]
    %v1250 = vld [vmem:[%s5] sm:$0x1]
    %v1252 = vlaneseq
    %v1253 = vshrl.u32 %v1252, 7
    %v1254 = vsub.s32 0, %v1253
    %v1255 = vrot.slane %v1250, %v1254
    %1257 = vmatprep.subr.mxu0 0.0
    %1258 = vmatpush1.msra.mxu0 %v1249
    %1259 = vmatprep.subr.mxu0 0.0
    %1260 = vmatpush1.msra.mxu0 %v1248
    %1261 = vmatprep.subr.mxu0 0.0
    %1262 = vmatpush1.msra.mxu0 %v1247
    %1263 = vmatprep.subr.mxu0 0.0
    %1264 = vmatpush1.msra.mxu0 %v1246
    %1265 = vmatprep.subr.mxu0 0.0
    %1266 = vmatpush1.msra.mxu0 %v1245
    %1267 = vmatprep.subr.mxu0 0.0
    %1268 = vmatpush1.msra.mxu0 %v1244
    %1269 = vmatprep.subr.mxu0 0.0
    %1270 = vmatpush1.msra.mxu0 %v1243
    %1271 = vmatprep.subr.mxu0 0.0
    %1272 = vmatpush1.msra.mxu0 %v1242
    %1273 = vmatprep.subr.mxu0 0.0
    %1274 = vmatpush1.msra.mxu0 %v1241
    %1275 = vmatprep.subr.mxu0 0.0
    %1276 = vmatpush1.msra.mxu0 %v1240
    %1277 = vmatprep.subr.mxu0 0.0
    %1278 = vmatpush1.msra.mxu0 %v1239
    %1279 = vmatprep.subr.mxu0 0.0
    %1280 = vmatpush1.msra.mxu0 %v1238
    %1281 = vmatprep.subr.mxu0 0.0
    %1282 = vmatpush1.msra.mxu0 %v1237
    %1283 = vmatprep.subr.mxu0 0.0
    %1284 = vmatpush1.msra.mxu0 %v1236
    %1285 = vmatprep.subr.mxu0 0.0
    %1286 = vmatpush1.msra.mxu0 %v1235
    %1287 = vmatprep.subr.mxu0 0.0
    %1288 = vmatpush1.msra.mxu0 %v1234
    %1289 = vmatprep.subr.mxu0 0.0
    %1290 = vmatpush2.msra.mxu0 0.0
    %1291 = vmatprep.subr.mxu0 0.0
    %1292 = vmatpush2.msra.mxu0 0.0
    %1293 = vmatprep.subr.mxu0 0.0
    %1294 = vmatpush2.msra.mxu0 0.0
    %1295 = vmatprep.subr.mxu0 0.0
    %1296 = vmatpush2.msra.mxu0 0.0
    %1297 = vmatprep.subr.mxu0 0.0
    %1298 = vmatpush2.msra.mxu0 0.0
    %1299 = vmatprep.subr.mxu0 0.0
    %1300 = vmatpush2.msra.mxu0 0.0
    %1301 = vmatprep.subr.mxu0 0.0
    %1302 = vmatpush2.msra.mxu0 0.0
    %1303 = vmatprep.subr.mxu0 0.0
    %1304 = vmatpush2.msra.mxu0 0.0
    %1305 = vmatprep.subr.mxu0 0.0
    %1306 = vmatpush2.msra.mxu0 0.0
    %1307 = vmatprep.subr.mxu0 0.0
    %1308 = vmatpush2.msra.mxu0 0.0
    %1309 = vmatprep.subr.mxu0 0.0
    %1310 = vmatpush2.msra.mxu0 0.0
    %1311 = vmatprep.subr.mxu0 0.0
    %1312 = vmatpush2.msra.mxu0 0.0
    %1313 = vmatprep.subr.mxu0 0.0
    %1314 = vmatpush2.msra.mxu0 0.0
    %1315 = vmatprep.subr.mxu0 0.0
    %1316 = vmatpush2.msra.mxu0 0.0
    %1317 = vmatprep.subr.mxu0 0.0
    %1318 = vmatpush2.msra.mxu0 0.0
    %1319 = vmatprep.subr.mxu0 0.0
    %1320 = vmatpush2.msra.mxu0 0.0
    %1321 = vmatprep.mubr.f32.mxu0 0.0
    %1322 = vmatmul.mubr.f32.gmra.mxu0 %v1233
    %v1323 = vpop.f32.mrf.mxu0
    %v1324 = vadd.f32 %v1255, %v1323
    %v1325 = vpop.f32.mrf.mxu0
    %1326 = vdwg.mxu0
    %v1327 = vlaneseq
    %v1328 = vand.u32 %v1327, 127
    %vm1329 = vcmp.lt.s32.totalorder %v1328, 18
    %v1330 = vsel %vm1329, %v1324, -1e+30
    %1331 = vmax.xlane.f32.xlu0 %v1330
    %v1332 = vpop.xlane.xlu0 %1331
    %v1333 = vsub.f32 %v1330, %v1332
    %v1334 = vmul.f32 %v1333, 1.442695
    %v1335 = vpow.pop %v1334
    %1336 = vadd.xlane.f32.xlu0 %v1335
    %v1337 = vpop.xlane.xlu0 %1336
    %v1338 = vlog2.pop %v1337
    %v1339 = vmul.f32 %v1338, 0.6931472
    %v1340 = vadd.f32 %v1332, %v1339
    %v1341 = vsub.f32 %v1324, %v1340
    %v1342 = vsel %vm1329, %v1341, 0.0
    %1343 = vst [vmem:[#allocation10] sm:$0xff] %v1342
    // Predicated region
    $region34: #{tpu_custom_call.1} parent=1 // pred_check
      _
    $region35: #{tpu_custom_call.1} parent=1 // pred_check_branch
      %1345 = sbr.rel (0) target = $region37
    $region36: #{tpu_custom_call.1} parent=1 // pred_region
      %s1347 = ssub.s32 128, 128
      %1348 = vsyncadd [#allocation6], %s1347
      %s1350 = sshll.u32 [#allocation10], 4
      %s1351 = int_to_ptr.vmem [resolvable:$true] %s1350
      %1353 = dma.vmem_to_hbm [thread:$0]  %s1351, 128, %s6, [#allocation6]
    $region37: #{tpu_custom_call.1} parent=1 // pred_fallthru
      _
    // Predicated region
    $region38: #{tpu_custom_call.1} parent=1 // pred_check
      _
    $region39: #{tpu_custom_call.1} parent=1 // pred_check_branch
      %1355 = sbr.rel (0) target = $region41
    $region40: #{tpu_custom_call.1} parent=1 // pred_region
      %1356 = dma.done [#allocation6], 128
    $region41: #{tpu_custom_call.1} parent=1 // pred_fallthru
      _
    %1357 = vsyncpa [#allocation5], 1
    %1358 = vsyncpa [#allocation8], 1
    %1359 = vsyncpa [#allocation6], 1

</llo_original>
